<compile_context>
chip_gen: v7x
topology: tpu7x:2x2x1
jax: 0.10.0
libtpu: 0.0.40
codegen_flags: <defaults>
</compile_context>

<pallas_src>
import jax
import jax.numpy as jnp
from jax import lax
from jax.experimental import pallas as pl
from jax.experimental.pallas import tpu as pltpu

HIDDEN = 64          # LSTM hidden size of the PyTorch module
SEQ_LENGTH = 16      # LSTM input_size
NR_CLASSES = 2       # len(set(y_vals)) == 2

HP = 128             # hidden size padded to one full 128-lane vreg width
GP = 4 * HP          # padded gate axis (i, f, g, o), each gate 128-lane aligned
C_PAD = 128          # lane-dense output width; real logits live in [:NR_CLASSES]


def _build_kernel(t_chunk, t_real, needs_mask, unroll):
    """Kernel factory; t_chunk / t_real / needs_mask / unroll are static."""

    def kernel(x_ref, wih_ref, whh_ref, b_ref,
               w1_ref, b1_ref, w2_ref, b2_ref,
               out_ref, h_scr, c_scr, gx_scr):
        # x_ref:   (t_chunk, b_tile, D_in)   time-major input chunk
        # wih_ref: (D_in, GP) bf16   whh_ref: (HP, GP) bf16   b_ref: (1, GP) f32
        # w1_ref:  (HP, HP), b1_ref: (1, HP), w2_ref: (HP, C_PAD), b2_ref: (1, C_PAD)
        # out_ref: (b_tile, C_PAD)
        # h_scr/c_scr: (b_tile, HP) persistent    gx_scr: (t_chunk, b_tile, GP)
        t_idx = pl.program_id(1)

        @pl.when(t_idx == 0)
        def _init():
            h_scr[...] = jnp.zeros_like(h_scr)
            c_scr[...] = jnp.zeros_like(c_scr)

        tc, bt, d = x_ref.shape

        # Hoisted input projection: ONE MXU matmul (M = t_chunk*b_tile) for the
        # whole chunk, bf16 inputs / f32 accumulation, bias folded in.  Stored
        # time-major so each recurrence step reads a contiguous (bt, GP) slab.
        x_flat = x_ref[...].reshape(tc * bt, d).astype(jnp.bfloat16)
        gx = jnp.dot(x_flat, wih_ref[...], preferred_element_type=jnp.float32)
        gx_scr[...] = (gx + b_ref[...]).reshape(tc, bt, GP)

        def step(t, carry):
            h, c = carry
            # Stream W_hh from VMEM each step (never held as a live vreg value).
            g = gx_scr[t] + jnp.dot(h.astype(jnp.bfloat16), whh_ref[...],
                                    preferred_element_type=jnp.float32)
            # Gate slices are 128-lane aligned (HP = 128).
            i_g = jax.nn.sigmoid(g[:, 0 * HP:1 * HP])
            f_g = jax.nn.sigmoid(g[:, 1 * HP:2 * HP])
            g_g = jnp.tanh(g[:, 2 * HP:3 * HP])
            o_g = jax.nn.sigmoid(g[:, 3 * HP:4 * HP])
            c_new = f_g * c + i_g * g_g
            h_new = o_g * jnp.tanh(c_new)
            if needs_mask:
                # Padded timesteps (beyond the real sequence) must NOT update
                # the state — zero inputs still mutate h/c otherwise.
                valid = (t_idx * t_chunk + t) < t_real
                h_new = jnp.where(valid, h_new, h)
                c_new = jnp.where(valid, c_new, c)
            return h_new, c_new

        h, c = lax.fori_loop(0, t_chunk, step, (h_scr[...], c_scr[...]),
                             unroll=unroll)
        h_scr[...] = h
        c_scr[...] = c

        # Head only on the last chunk, on h_T (== PyTorch head(lstm)[:, -1]).
        @pl.when(t_idx == pl.num_programs(1) - 1)
        def _head():
            z = jnp.dot(h, w1_ref[...], preferred_element_type=jnp.float32) + b1_ref[...]
            z = jnp.maximum(z, 0.0)                     # ReLU; Dropout = identity
            out_ref[...] = (jnp.dot(z, w2_ref[...], preferred_element_type=jnp.float32)
                            + b2_ref[...])              # lane-dense (b_tile, 128)

    return kernel


def init_params(key, input_size=SEQ_LENGTH, hidden=HIDDEN, n_classes=NR_CLASSES):
    """PyTorch-layout parameters, U(-1/sqrt(H), 1/sqrt(H)) init."""
    ks = jax.random.split(key, 8)
    bound = 1.0 / jnp.sqrt(hidden)
    u = lambda k, shape: jax.random.uniform(k, shape, jnp.float32, -bound, bound)
    return dict(
        w_ih=u(ks[0], (4 * hidden, input_size)),
        w_hh=u(ks[1], (4 * hidden, hidden)),
        b_ih=u(ks[2], (4 * hidden,)),
        b_hh=u(ks[3], (4 * hidden,)),
        w1=u(ks[4], (hidden, hidden)),
        b1=u(ks[5], (hidden,)),
        w2=u(ks[6], (n_classes, hidden)),
        b2=u(ks[7], (n_classes,)),
    )


def pad_params(p, hidden=HIDDEN, n_classes=NR_CLASSES):
    """Transpose + zero-pad params into the kernel's 128-lane-aligned layout.

    Padding is exact: padded gate-bias lanes are 0 => i/f/o pad = sigmoid(0),
    g pad = tanh(0) = 0, so padded h/c lanes stay exactly 0; padded rows of
    whh/w1/w2 are 0, so they never contribute.  Matmul weights stored as bf16
    (f32 accumulation in-kernel); zeros are exact in bf16.
    """
    H = hidden

    def pad_gate_cols(w_t):                       # (rows, 4H) -> (rows, GP)
        out = jnp.zeros((w_t.shape[0], GP), jnp.float32)
        for g in range(4):                        # preserve (i, f, g, o) order
            out = out.at[:, g * HP:g * HP + H].set(w_t[:, g * H:(g + 1) * H])
        return out

    wih_t = pad_gate_cols(p["w_ih"].T).astype(jnp.bfloat16)           # (D_in, GP)
    whh_t = jnp.zeros((HP, GP), jnp.float32).at[:H, :].set(
        pad_gate_cols(p["w_hh"].T)).astype(jnp.bfloat16)              # (HP, GP)
    b_gates = pad_gate_cols((p["b_ih"] + p["b_hh"])[None, :])         # (1, GP) f32

    w1_t = jnp.zeros((HP, HP), jnp.float32).at[:H, :H].set(p["w1"].T)
    b1 = jnp.zeros((1, HP), jnp.float32).at[:, :H].set(p["b1"][None, :])
    w2_t = jnp.zeros((HP, C_PAD), jnp.float32).at[:H, :n_classes].set(p["w2"].T)
    b2 = jnp.zeros((1, C_PAD), jnp.float32).at[:, :n_classes].set(p["b2"][None, :])
    return dict(wih_t=wih_t, whh_t=whh_t, b_gates=b_gates,
                w1_t=w1_t, b1=b1, w2_t=w2_t, b2=b2)


def _pick_time_chunk(T, target=32):
    """Chunk <= target (keeps the gates scratch small and streaming).  Prefer a
    multiple-of-8 divisor of T; otherwise T is padded up and masked."""
    if T <= target:
        return T
    for c in range(target, 7, -1):
        if T % c == 0 and c % 8 == 0:
            return c
    return target


def _pick_b_tile(Bp, target=256):
    """Largest multiple-of-8 divisor of Bp <= target; capped at Bp//2 when the
    batch is big enough so the 'parallel' axis has >=2 blocks (megacore)."""
    cap = min(target, Bp)
    if Bp >= 16:
        cap = min(cap, max(8, (Bp // 2) // 8 * 8))
    cap = max(8, cap - cap % 8)
    for bt in range(cap, 7, -8):
        if Bp % bt == 0:
            return bt
    return 8


def _vmem_limit_bytes(b_tile, t_chunk, d_in):
    """Scoped VMEM sized from the actual footprint (gates scratch + double-
    buffered blocks + weights), clamped under the v7x 64 MiB physical VMEM."""
    gx = 4 * t_chunk * b_tile * GP                       # gates scratch (f32)
    xb = 2 * 4 * b_tile * t_chunk * d_in                 # double-buffered x block
    hc = 2 * 4 * b_tile * HP                             # h, c scratch
    wts = 2 * (2 * d_in * GP + 2 * HP * GP               # bf16 wih, whh (x2 bufs)
               + 4 * (GP + HP * HP + HP + HP * C_PAD + C_PAD))
    out = 2 * 4 * b_tile * C_PAD
    est = gx + xb + hc + wts + out
    return int(min(max(est * 3 // 2, 32 * 1024 * 1024), 48 * 1024 * 1024))


def lstm_model_forward(x, kparams):
    """x: (B, T, seq_length), batch-first like the PyTorch module."""
    x = x.astype(jnp.float32)
    B, T, D = x.shape
    assert D == SEQ_LENGTH

    Bp = ((B + 7) // 8) * 8                     # sublane-aligned batch
    t_chunk = _pick_time_chunk(T)
    n_t = pl.cdiv(T, t_chunk)
    Tp = n_t * t_chunk
    needs_mask = (Tp != T)

    b_tile = _pick_b_tile(Bp)
    n_b = Bp // b_tile

    if (Bp, Tp) != (B, T):
        x = jnp.pad(x, ((0, Bp - B), (0, Tp - T), (0, 0)))
    # Single XLA transpose: time-major input so the hoisted projection writes a
    # time-major scratch and each step reads a contiguous (b_tile, GP) slab.
    x_tm = jnp.transpose(x, (1, 0, 2))          # (Tp, Bp, D)

    kernel = _build_kernel(t_chunk=t_chunk, t_real=T, needs_mask=needs_mask,
                           unroll=min(8, t_chunk))

    grid_spec = pltpu.PrefetchScalarGridSpec(
        num_scalar_prefetch=0,
        grid=(n_b, n_t),
        in_specs=[
            pl.BlockSpec((t_chunk, b_tile, D), lambda b, t: (t, b, 0)),   # x chunk
            pl.BlockSpec((D, GP), lambda b, t: (0, 0)),                   # wih_t
            pl.BlockSpec((HP, GP), lambda b, t: (0, 0)),                  # whh_t
            pl.BlockSpec((1, GP), lambda b, t: (0, 0)),                   # b_gates
            pl.BlockSpec((HP, HP), lambda b, t: (0, 0)),                  # w1_t
            pl.BlockSpec((1, HP), lambda b, t: (0, 0)),                   # b1
            pl.BlockSpec((HP, C_PAD), lambda b, t: (0, 0)),               # w2_t
            pl.BlockSpec((1, C_PAD), lambda b, t: (0, 0)),                # b2
        ],
        out_specs=pl.BlockSpec((b_tile, C_PAD), lambda b, t: (b, 0)),
        scratch_shapes=[pltpu.VMEM((b_tile, HP), jnp.float32),            # h
                        pltpu.VMEM((b_tile, HP), jnp.float32),            # c
                        pltpu.VMEM((t_chunk, b_tile, GP), jnp.float32)],  # gates_x
    )

    flops = (2 * Bp * Tp * (D + HIDDEN) * 4 * HIDDEN
             + 2 * Bp * (HIDDEN * HIDDEN + HIDDEN * NR_CLASSES))
    bytes_accessed = (4 * x_tm.size + 2 * (D * GP + HP * GP) + 4 * GP
                      + 4 * (HP * HP + HP + HP * C_PAD + C_PAD) + 4 * Bp * C_PAD)
    cost = pl.CostEstimate(flops=flops,
                           transcendentals=5 * Bp * Tp * HIDDEN,
                           bytes_accessed=bytes_accessed)

    out = pl.pallas_call(
        kernel,
        out_shape=jax.ShapeDtypeStruct((Bp, C_PAD), jnp.float32),
        grid_spec=grid_spec,
        compiler_params=pltpu.CompilerParams(
            dimension_semantics=("parallel", "arbitrary"),
            vmem_limit_bytes=_vmem_limit_bytes(b_tile, t_chunk, D)),
        cost_estimate=cost,
    )(x_tm, kparams["wih_t"], kparams["whh_t"], kparams["b_gates"],
      kparams["w1_t"], kparams["b1"], kparams["w2_t"], kparams["b2"])

    return out[:B, :NR_CLASSES]


def _reference_forward(x, p):
    """Pure-JAX f32 reference (unpadded PyTorch layout) for correctness checking."""
    x = x.astype(jnp.float32)
    B, T, _ = x.shape
    H = HIDDEN
    wih_t, whh_t = p["w_ih"].T, p["w_hh"].T
    b = (p["b_ih"] + p["b_hh"])[None, :]
    h = jnp.zeros((B, H), jnp.float32)
    c = jnp.zeros((B, H), jnp.float32)
    for t in range(T):
        gates = x[:, t, :] @ wih_t + h @ whh_t + b
        i_g = jax.nn.sigmoid(gates[:, 0 * H:1 * H])
        f_g = jax.nn.sigmoid(gates[:, 1 * H:2 * H])
        g_g = jnp.tanh(gates[:, 2 * H:3 * H])
        o_g = jax.nn.sigmoid(gates[:, 3 * H:4 * H])
        c = f_g * c + i_g * g_g
        h = o_g * jnp.tanh(c)
    z = jnp.maximum(h @ p["w1"].T + p["b1"][None, :], 0.0)
    return z @ p["w2"].T + p["b2"][None, :]


if __name__ == "__main__":
    key = jax.random.PRNGKey(0)
    k_param, k_x = jax.random.split(key)

    B, T, D = 2, 8, SEQ_LENGTH
    x = jax.random.normal(k_x, (B, T, D), jnp.float32)

    params = init_params(k_param)
    kparams = pad_params(params)

    out = jax.block_until_ready(lstm_model_forward(x, kparams))
    ref = _reference_forward(x, params)

    assert out.shape == (B, NR_CLASSES), out.shape
    # bf16 matmul inputs (f32 accumulation) vs the f32 reference -> loosened tol.
    assert jnp.allclose(out, ref, atol=5e-2, rtol=5e-2), (out, ref)
    print("KERNEL_OK")
</pallas_src>

<mosaic_0001>
module attributes {stable_mosaic.version = 11 : i64} {
  func.func @kernel(%arg0: i32, %arg1: i32, %arg2: memref<8x8x16xf32, #tpu.memory_space<vmem>>, %arg3: memref<16x512xbf16, #tpu.memory_space<vmem>>, %arg4: memref<128x512xbf16, #tpu.memory_space<vmem>>, %arg5: memref<1x512xf32, #tpu.memory_space<vmem>>, %arg6: memref<128x128xf32, #tpu.memory_space<vmem>>, %arg7: memref<1x128xf32, #tpu.memory_space<vmem>>, %arg8: memref<128x128xf32, #tpu.memory_space<vmem>>, %arg9: memref<1x128xf32, #tpu.memory_space<vmem>>, %arg10: memref<8x128xf32, #tpu.memory_space<vmem>>, %arg11: memref<8x128xf32, #tpu.memory_space<vmem>>, %arg12: memref<8x128xf32, #tpu.memory_space<vmem>>, %arg13: memref<8x8x512xf32, #tpu.memory_space<vmem>>) attributes {dimension_semantics = [#tpu.dimension_semantics<parallel>, #tpu.dimension_semantics<arbitrary>], iteration_bounds = array<i64: 1, 1>, scalar_prefetch = 0 : i64, scratch_operands = 3 : i64, tpu.core_type = #tpu.core_type<tc>, window_params = [{transform_indices = @transform_0, window_bounds = array<i64: 8, 8, 16>}, {pipeline_mode = #tpu.pipeline_mode<synchronous>, transform_indices = @transform_1, window_bounds = array<i64: 16, 512>}, {pipeline_mode = #tpu.pipeline_mode<synchronous>, transform_indices = @transform_2, window_bounds = array<i64: 128, 512>}, {pipeline_mode = #tpu.pipeline_mode<synchronous>, transform_indices = @transform_3, window_bounds = array<i64: 1, 512>}, {pipeline_mode = #tpu.pipeline_mode<synchronous>, transform_indices = @transform_4, window_bounds = array<i64: 128, 128>}, {pipeline_mode = #tpu.pipeline_mode<synchronous>, transform_indices = @transform_5, window_bounds = array<i64: 1, 128>}, {pipeline_mode = #tpu.pipeline_mode<synchronous>, transform_indices = @transform_6, window_bounds = array<i64: 128, 128>}, {pipeline_mode = #tpu.pipeline_mode<synchronous>, transform_indices = @transform_7, window_bounds = array<i64: 1, 128>}, {transform_indices = @transform_8, window_bounds = array<i64: 8, 128>}]} {
    %c0_i32 = arith.constant 0 : i32
    %0 = arith.cmpi eq, %arg1, %c0_i32 : i32
    %1 = arith.extui %0 : i1 to i32
    %c0_i32_0 = arith.constant 0 : i32
    %2 = arith.cmpi ne, %1, %c0_i32_0 : i32
    scf.if %2 {
      %cst_85 = arith.constant 0.000000e+00 : f32
      %276 = vector.broadcast %cst_85 : f32 to vector<8x128xf32>
      %c0_86 = arith.constant 0 : index
      %c0_87 = arith.constant 0 : index
      %277 = vector.load %arg11[%c0_86, %c0_87] : memref<8x128xf32, #tpu.memory_space<vmem>>, vector<8x128xf32>
      tpu.vector_store %arg11[%c0_86, %c0_87], %276 {strides = array<i32>} : memref<8x128xf32, #tpu.memory_space<vmem>>, vector<8x128xf32>,
      %cst_88 = arith.constant 0.000000e+00 : f32
      %278 = vector.broadcast %cst_88 : f32 to vector<8x128xf32>
      %c0_89 = arith.constant 0 : index
      %c0_90 = arith.constant 0 : index
      %279 = vector.load %arg12[%c0_89, %c0_90] : memref<8x128xf32, #tpu.memory_space<vmem>>, vector<8x128xf32>
      tpu.vector_store %arg12[%c0_89, %c0_90], %278 {strides = array<i32>} : memref<8x128xf32, #tpu.memory_space<vmem>>, vector<8x128xf32>,
    } else {
    }
    %c0 = arith.constant 0 : index
    %c0_1 = arith.constant 0 : index
    %c0_2 = arith.constant 0 : index
    %3 = vector.load %arg2[%c0, %c0_1, %c0_2] : memref<8x8x16xf32, #tpu.memory_space<vmem>>, vector<8x8x16xf32>
    %4 = vector.shape_cast %3 : vector<8x8x16xf32> to vector<64x16xf32>
    %5 = arith.truncf %4 : vector<64x16xf32> to vector<64x16xbf16>
    %c0_3 = arith.constant 0 : index
    %c0_4 = arith.constant 0 : index
    %6 = vector.load %arg3[%c0_3, %c0_4] : memref<16x512xbf16, #tpu.memory_space<vmem>>, vector<16x512xbf16>
    %cst = arith.constant dense<0.000000e+00> : vector<64x512xf32>
    %7 = tpu.matmul %5, %6, %cst {dimension_numbers = #tpu.dot_dimension_numbers<[1], [0], [0], [1], [0, 0, 1, 1], [], []>} : vector<64x16xbf16>, vector<16x512xbf16>, vector<64x512xf32> -> vector<64x512xf32>
    %c0_5 = arith.constant 0 : index
    %c0_6 = arith.constant 0 : index
    %8 = vector.load %arg5[%c0_5, %c0_6] : memref<1x512xf32, #tpu.memory_space<vmem>>, vector<1x512xf32>
    %9 = vector.broadcast %8 : vector<1x512xf32> to vector<64x512xf32>
    %10 = arith.addf %7, %9 : vector<64x512xf32>
    %11 = vector.shape_cast %10 : vector<64x512xf32> to vector<8x8x512xf32>
    %c0_7 = arith.constant 0 : index
    %c0_8 = arith.constant 0 : index
    %c0_9 = arith.constant 0 : index
    %12 = vector.load %arg13[%c0_7, %c0_8, %c0_9] : memref<8x8x512xf32, #tpu.memory_space<vmem>>, vector<8x8x512xf32>
    tpu.vector_store %arg13[%c0_7, %c0_8, %c0_9], %11 {strides = array<i32>} : memref<8x8x512xf32, #tpu.memory_space<vmem>>, vector<8x8x512xf32>,
    %c0_10 = arith.constant 0 : index
    %c0_11 = arith.constant 0 : index
    %13 = vector.load %arg11[%c0_10, %c0_11] : memref<8x128xf32, #tpu.memory_space<vmem>>, vector<8x128xf32>
    %c0_12 = arith.constant 0 : index
    %c0_13 = arith.constant 0 : index
    %14 = vector.load %arg12[%c0_12, %c0_13] : memref<8x128xf32, #tpu.memory_space<vmem>>, vector<8x128xf32>
    %c0_i32_14 = arith.constant 0 : i32
    %15 = arith.index_cast %c0_i32_14 : i32 to index
    %c0_15 = arith.constant 0 : index
    %c0_16 = arith.constant 0 : index
    %16 = vector.load %arg13[%15, %c0_15, %c0_16] : memref<8x8x512xf32, #tpu.memory_space<vmem>>, vector<1x8x512xf32>
    %17 = vector.shape_cast %16 : vector<1x8x512xf32> to vector<8x512xf32>
    %18 = arith.truncf %13 : vector<8x128xf32> to vector<8x128xbf16>
    %c0_17 = arith.constant 0 : index
    %c0_18 = arith.constant 0 : index
    %19 = vector.load %arg4[%c0_17, %c0_18] : memref<128x512xbf16, #tpu.memory_space<vmem>>, vector<128x512xbf16>
    %cst_19 = arith.constant dense<0.000000e+00> : vector<8x512xf32>
    %20 = tpu.matmul %18, %19, %cst_19 {dimension_numbers = #tpu.dot_dimension_numbers<[1], [0], [0], [1], [0, 0, 1, 1], [], []>} : vector<8x128xbf16>, vector<128x512xbf16>, vector<8x512xf32> -> vector<8x512xf32>
    %21 = arith.addf %17, %20 : vector<8x512xf32>
    %22 = vector.extract_strided_slice %21 {offsets = [0, 0], sizes = [8, 128], strides = [1, 1]} : vector<8x512xf32> to vector<8x128xf32>
    %23 = arith.negf %22 : vector<8x128xf32>
    %24 = math.exp %23 : vector<8x128xf32>
    %cst_20 = arith.constant 1.000000e+00 : f32
    %25 = vector.broadcast %cst_20 : f32 to vector<8x128xf32>
    %26 = arith.addf %25, %24 : vector<8x128xf32>
    %27 = arith.divf %25, %26 : vector<8x128xf32>
    %28 = vector.extract_strided_slice %21 {offsets = [0, 128], sizes = [8, 128], strides = [1, 1]} : vector<8x512xf32> to vector<8x128xf32>
    %29 = arith.negf %28 : vector<8x128xf32>
    %30 = math.exp %29 : vector<8x128xf32>
    %cst_21 = arith.constant 1.000000e+00 : f32
    %31 = vector.broadcast %cst_21 : f32 to vector<8x128xf32>
    %32 = arith.addf %31, %30 : vector<8x128xf32>
    %33 = arith.divf %31, %32 : vector<8x128xf32>
    %34 = vector.extract_strided_slice %21 {offsets = [0, 256], sizes = [8, 128], strides = [1, 1]} : vector<8x512xf32> to vector<8x128xf32>
    %35 = math.tanh %34 : vector<8x128xf32>
    %36 = vector.extract_strided_slice %21 {offsets = [0, 384], sizes = [8, 128], strides = [1, 1]} : vector<8x512xf32> to vector<8x128xf32>
    %37 = arith.negf %36 : vector<8x128xf32>
    %38 = math.exp %37 : vector<8x128xf32>
    %cst_22 = arith.constant 1.000000e+00 : f32
    %39 = vector.broadcast %cst_22 : f32 to vector<8x128xf32>
    %40 = arith.addf %39, %38 : vector<8x128xf32>
    %41 = arith.divf %39, %40 : vector<8x128xf32>
    %42 = arith.mulf %33, %14 : vector<8x128xf32>
    %43 = arith.mulf %27, %35 : vector<8x128xf32>
    %44 = arith.addf %42, %43 : vector<8x128xf32>
    %45 = math.tanh %44 : vector<8x128xf32>
    %46 = arith.mulf %41, %45 : vector<8x128xf32>
    %c1_i32 = arith.constant 1 : i32
    %47 = arith.index_cast %c1_i32 : i32 to index
    %c0_23 = arith.constant 0 : index
    %c0_24 = arith.constant 0 : index
    %48 = vector.load %arg13[%47, %c0_23, %c0_24] : memref<8x8x512xf32, #tpu.memory_space<vmem>>, vector<1x8x512xf32>
    %49 = vector.shape_cast %48 : vector<1x8x512xf32> to vector<8x512xf32>
    %50 = arith.truncf %46 : vector<8x128xf32> to vector<8x128xbf16>
    %c0_25 = arith.constant 0 : index
    %c0_26 = arith.constant 0 : index
    %51 = vector.load %arg4[%c0_25, %c0_26] : memref<128x512xbf16, #tpu.memory_space<vmem>>, vector<128x512xbf16>
    %cst_27 = arith.constant dense<0.000000e+00> : vector<8x512xf32>
    %52 = tpu.matmul %50, %51, %cst_27 {dimension_numbers = #tpu.dot_dimension_numbers<[1], [0], [0], [1], [0, 0, 1, 1], [], []>} : vector<8x128xbf16>, vector<128x512xbf16>, vector<8x512xf32> -> vector<8x512xf32>
    %53 = arith.addf %49, %52 : vector<8x512xf32>
    %54 = vector.extract_strided_slice %53 {offsets = [0, 0], sizes = [8, 128], strides = [1, 1]} : vector<8x512xf32> to vector<8x128xf32>
    %55 = arith.negf %54 : vector<8x128xf32>
    %56 = math.exp %55 : vector<8x128xf32>
    %cst_28 = arith.constant 1.000000e+00 : f32
    %57 = vector.broadcast %cst_28 : f32 to vector<8x128xf32>
    %58 = arith.addf %57, %56 : vector<8x128xf32>
    %59 = arith.divf %57, %58 : vector<8x128xf32>
    %60 = vector.extract_strided_slice %53 {offsets = [0, 128], sizes = [8, 128], strides = [1, 1]} : vector<8x512xf32> to vector<8x128xf32>
    %61 = arith.negf %60 : vector<8x128xf32>
    %62 = math.exp %61 : vector<8x128xf32>
    %cst_29 = arith.constant 1.000000e+00 : f32
    %63 = vector.broadcast %cst_29 : f32 to vector<8x128xf32>
    %64 = arith.addf %63, %62 : vector<8x128xf32>
    %65 = arith.divf %63, %64 : vector<8x128xf32>
    %66 = vector.extract_strided_slice %53 {offsets = [0, 256], sizes = [8, 128], strides = [1, 1]} : vector<8x512xf32> to vector<8x128xf32>
    %67 = math.tanh %66 : vector<8x128xf32>
    %68 = vector.extract_strided_slice %53 {offsets = [0, 384], sizes = [8, 128], strides = [1, 1]} : vector<8x512xf32> to vector<8x128xf32>
    %69 = arith.negf %68 : vector<8x128xf32>
    %70 = math.exp %69 : vector<8x128xf32>
    %cst_30 = arith.constant 1.000000e+00 : f32
    %71 = vector.broadcast %cst_30 : f32 to vector<8x128xf32>
    %72 = arith.addf %71, %70 : vector<8x128xf32>
    %73 = arith.divf %71, %72 : vector<8x128xf32>
    %74 = arith.mulf %65, %44 : vector<8x128xf32>
    %75 = arith.mulf %59, %67 : vector<8x128xf32>
    %76 = arith.addf %74, %75 : vector<8x128xf32>
    %77 = math.tanh %76 : vector<8x128xf32>
    %78 = arith.mulf %73, %77 : vector<8x128xf32>
    %c2_i32 = arith.constant 2 : i32
    %79 = arith.index_cast %c2_i32 : i32 to index
    %c0_31 = arith.constant 0 : index
    %c0_32 = arith.constant 0 : index
    %80 = vector.load %arg13[%79, %c0_31, %c0_32] : memref<8x8x512xf32, #tpu.memory_space<vmem>>, vector<1x8x512xf32>
    %81 = vector.shape_cast %80 : vector<1x8x512xf32> to vector<8x512xf32>
    %82 = arith.truncf %78 : vector<8x128xf32> to vector<8x128xbf16>
    %c0_33 = arith.constant 0 : index
    %c0_34 = arith.constant 0 : index
    %83 = vector.load %arg4[%c0_33, %c0_34] : memref<128x512xbf16, #tpu.memory_space<vmem>>, vector<128x512xbf16>
    %cst_35 = arith.constant dense<0.000000e+00> : vector<8x512xf32>
    %84 = tpu.matmul %82, %83, %cst_35 {dimension_numbers = #tpu.dot_dimension_numbers<[1], [0], [0], [1], [0, 0, 1, 1], [], []>} : vector<8x128xbf16>, vector<128x512xbf16>, vector<8x512xf32> -> vector<8x512xf32>
    %85 = arith.addf %81, %84 : vector<8x512xf32>
    %86 = vector.extract_strided_slice %85 {offsets = [0, 0], sizes = [8, 128], strides = [1, 1]} : vector<8x512xf32> to vector<8x128xf32>
    %87 = arith.negf %86 : vector<8x128xf32>
    %88 = math.exp %87 : vector<8x128xf32>
    %cst_36 = arith.constant 1.000000e+00 : f32
    %89 = vector.broadcast %cst_36 : f32 to vector<8x128xf32>
    %90 = arith.addf %89, %88 : vector<8x128xf32>
    %91 = arith.divf %89, %90 : vector<8x128xf32>
    %92 = vector.extract_strided_slice %85 {offsets = [0, 128], sizes = [8, 128], strides = [1, 1]} : vector<8x512xf32> to vector<8x128xf32>
    %93 = arith.negf %92 : vector<8x128xf32>
    %94 = math.exp %93 : vector<8x128xf32>
    %cst_37 = arith.constant 1.000000e+00 : f32
    %95 = vector.broadcast %cst_37 : f32 to vector<8x128xf32>
    %96 = arith.addf %95, %94 : vector<8x128xf32>
    %97 = arith.divf %95, %96 : vector<8x128xf32>
    %98 = vector.extract_strided_slice %85 {offsets = [0, 256], sizes = [8, 128], strides = [1, 1]} : vector<8x512xf32> to vector<8x128xf32>
    %99 = math.tanh %98 : vector<8x128xf32>
    %100 = vector.extract_strided_slice %85 {offsets = [0, 384], sizes = [8, 128], strides = [1, 1]} : vector<8x512xf32> to vector<8x128xf32>
    %101 = arith.negf %100 : vector<8x128xf32>
    %102 = math.exp %101 : vector<8x128xf32>
    %cst_38 = arith.constant 1.000000e+00 : f32
    %103 = vector.broadcast %cst_38 : f32 to vector<8x128xf32>
    %104 = arith.addf %103, %102 : vector<8x128xf32>
    %105 = arith.divf %103, %104 : vector<8x128xf32>
    %106 = arith.mulf %97, %76 : vector<8x128xf32>
    %107 = arith.mulf %91, %99 : vector<8x128xf32>
    %108 = arith.addf %106, %107 : vector<8x128xf32>
    %109 = math.tanh %108 : vector<8x128xf32>
    %110 = arith.mulf %105, %109 : vector<8x128xf32>
    %c3_i32 = arith.constant 3 : i32
    %111 = arith.index_cast %c3_i32 : i32 to index
    %c0_39 = arith.constant 0 : index
    %c0_40 = arith.constant 0 : index
    %112 = vector.load %arg13[%111, %c0_39, %c0_40] : memref<8x8x512xf32, #tpu.memory_space<vmem>>, vector<1x8x512xf32>
    %113 = vector.shape_cast %112 : vector<1x8x512xf32> to vector<8x512xf32>
    %114 = arith.truncf %110 : vector<8x128xf32> to vector<8x128xbf16>
    %c0_41 = arith.constant 0 : index
    %c0_42 = arith.constant 0 : index
    %115 = vector.load %arg4[%c0_41, %c0_42] : memref<128x512xbf16, #tpu.memory_space<vmem>>, vector<128x512xbf16>
    %cst_43 = arith.constant dense<0.000000e+00> : vector<8x512xf32>
    %116 = tpu.matmul %114, %115, %cst_43 {dimension_numbers = #tpu.dot_dimension_numbers<[1], [0], [0], [1], [0, 0, 1, 1], [], []>} : vector<8x128xbf16>, vector<128x512xbf16>, vector<8x512xf32> -> vector<8x512xf32>
    %117 = arith.addf %113, %116 : vector<8x512xf32>
    %118 = vector.extract_strided_slice %117 {offsets = [0, 0], sizes = [8, 128], strides = [1, 1]} : vector<8x512xf32> to vector<8x128xf32>
    %119 = arith.negf %118 : vector<8x128xf32>
    %120 = math.exp %119 : vector<8x128xf32>
    %cst_44 = arith.constant 1.000000e+00 : f32
    %121 = vector.broadcast %cst_44 : f32 to vector<8x128xf32>
    %122 = arith.addf %121, %120 : vector<8x128xf32>
    %123 = arith.divf %121, %122 : vector<8x128xf32>
    %124 = vector.extract_strided_slice %117 {offsets = [0, 128], sizes = [8, 128], strides = [1, 1]} : vector<8x512xf32> to vector<8x128xf32>
    %125 = arith.negf %124 : vector<8x128xf32>
    %126 = math.exp %125 : vector<8x128xf32>
    %cst_45 = arith.constant 1.000000e+00 : f32
    %127 = vector.broadcast %cst_45 : f32 to vector<8x128xf32>
    %128 = arith.addf %127, %126 : vector<8x128xf32>
    %129 = arith.divf %127, %128 : vector<8x128xf32>
    %130 = vector.extract_strided_slice %117 {offsets = [0, 256], sizes = [8, 128], strides = [1, 1]} : vector<8x512xf32> to vector<8x128xf32>
    %131 = math.tanh %130 : vector<8x128xf32>
    %132 = vector.extract_strided_slice %117 {offsets = [0, 384], sizes = [8, 128], strides = [1, 1]} : vector<8x512xf32> to vector<8x128xf32>
    %133 = arith.negf %132 : vector<8x128xf32>
    %134 = math.exp %133 : vector<8x128xf32>
    %cst_46 = arith.constant 1.000000e+00 : f32
    %135 = vector.broadcast %cst_46 : f32 to vector<8x128xf32>
    %136 = arith.addf %135, %134 : vector<8x128xf32>
    %137 = arith.divf %135, %136 : vector<8x128xf32>
    %138 = arith.mulf %129, %108 : vector<8x128xf32>
    %139 = arith.mulf %123, %131 : vector<8x128xf32>
    %140 = arith.addf %138, %139 : vector<8x128xf32>
    %141 = math.tanh %140 : vector<8x128xf32>
    %142 = arith.mulf %137, %141 : vector<8x128xf32>
    %c4_i32 = arith.constant 4 : i32
    %143 = arith.index_cast %c4_i32 : i32 to index
    %c0_47 = arith.constant 0 : index
    %c0_48 = arith.constant 0 : index
    %144 = vector.load %arg13[%143, %c0_47, %c0_48] : memref<8x8x512xf32, #tpu.memory_space<vmem>>, vector<1x8x512xf32>
    %145 = vector.shape_cast %144 : vector<1x8x512xf32> to vector<8x512xf32>
    %146 = arith.truncf %142 : vector<8x128xf32> to vector<8x128xbf16>
    %c0_49 = arith.constant 0 : index
    %c0_50 = arith.constant 0 : index
    %147 = vector.load %arg4[%c0_49, %c0_50] : memref<128x512xbf16, #tpu.memory_space<vmem>>, vector<128x512xbf16>
    %cst_51 = arith.constant dense<0.000000e+00> : vector<8x512xf32>
    %148 = tpu.matmul %146, %147, %cst_51 {dimension_numbers = #tpu.dot_dimension_numbers<[1], [0], [0], [1], [0, 0, 1, 1], [], []>} : vector<8x128xbf16>, vector<128x512xbf16>, vector<8x512xf32> -> vector<8x512xf32>
    %149 = arith.addf %145, %148 : vector<8x512xf32>
    %150 = vector.extract_strided_slice %149 {offsets = [0, 0], sizes = [8, 128], strides = [1, 1]} : vector<8x512xf32> to vector<8x128xf32>
    %151 = arith.negf %150 : vector<8x128xf32>
    %152 = math.exp %151 : vector<8x128xf32>
    %cst_52 = arith.constant 1.000000e+00 : f32
    %153 = vector.broadcast %cst_52 : f32 to vector<8x128xf32>
    %154 = arith.addf %153, %152 : vector<8x128xf32>
    %155 = arith.divf %153, %154 : vector<8x128xf32>
    %156 = vector.extract_strided_slice %149 {offsets = [0, 128], sizes = [8, 128], strides = [1, 1]} : vector<8x512xf32> to vector<8x128xf32>
    %157 = arith.negf %156 : vector<8x128xf32>
    %158 = math.exp %157 : vector<8x128xf32>
    %cst_53 = arith.constant 1.000000e+00 : f32
    %159 = vector.broadcast %cst_53 : f32 to vector<8x128xf32>
    %160 = arith.addf %159, %158 : vector<8x128xf32>
    %161 = arith.divf %159, %160 : vector<8x128xf32>
    %162 = vector.extract_strided_slice %149 {offsets = [0, 256], sizes = [8, 128], strides = [1, 1]} : vector<8x512xf32> to vector<8x128xf32>
    %163 = math.tanh %162 : vector<8x128xf32>
    %164 = vector.extract_strided_slice %149 {offsets = [0, 384], sizes = [8, 128], strides = [1, 1]} : vector<8x512xf32> to vector<8x128xf32>
    %165 = arith.negf %164 : vector<8x128xf32>
    %166 = math.exp %165 : vector<8x128xf32>
    %cst_54 = arith.constant 1.000000e+00 : f32
    %167 = vector.broadcast %cst_54 : f32 to vector<8x128xf32>
    %168 = arith.addf %167, %166 : vector<8x128xf32>
    %169 = arith.divf %167, %168 : vector<8x128xf32>
    %170 = arith.mulf %161, %140 : vector<8x128xf32>
    %171 = arith.mulf %155, %163 : vector<8x128xf32>
    %172 = arith.addf %170, %171 : vector<8x128xf32>
    %173 = math.tanh %172 : vector<8x128xf32>
    %174 = arith.mulf %169, %173 : vector<8x128xf32>
    %c5_i32 = arith.constant 5 : i32
    %175 = arith.index_cast %c5_i32 : i32 to index
    %c0_55 = arith.constant 0 : index
    %c0_56 = arith.constant 0 : index
    %176 = vector.load %arg13[%175, %c0_55, %c0_56] : memref<8x8x512xf32, #tpu.memory_space<vmem>>, vector<1x8x512xf32>
    %177 = vector.shape_cast %176 : vector<1x8x512xf32> to vector<8x512xf32>
    %178 = arith.truncf %174 : vector<8x128xf32> to vector<8x128xbf16>
    %c0_57 = arith.constant 0 : index
    %c0_58 = arith.constant 0 : index
    %179 = vector.load %arg4[%c0_57, %c0_58] : memref<128x512xbf16, #tpu.memory_space<vmem>>, vector<128x512xbf16>
    %cst_59 = arith.constant dense<0.000000e+00> : vector<8x512xf32>
    %180 = tpu.matmul %178, %179, %cst_59 {dimension_numbers = #tpu.dot_dimension_numbers<[1], [0], [0], [1], [0, 0, 1, 1], [], []>} : vector<8x128xbf16>, vector<128x512xbf16>, vector<8x512xf32> -> vector<8x512xf32>
    %181 = arith.addf %177, %180 : vector<8x512xf32>
    %182 = vector.extract_strided_slice %181 {offsets = [0, 0], sizes = [8, 128], strides = [1, 1]} : vector<8x512xf32> to vector<8x128xf32>
    %183 = arith.negf %182 : vector<8x128xf32>
    %184 = math.exp %183 : vector<8x128xf32>
    %cst_60 = arith.constant 1.000000e+00 : f32
    %185 = vector.broadcast %cst_60 : f32 to vector<8x128xf32>
    %186 = arith.addf %185, %184 : vector<8x128xf32>
    %187 = arith.divf %185, %186 : vector<8x128xf32>
    %188 = vector.extract_strided_slice %181 {offsets = [0, 128], sizes = [8, 128], strides = [1, 1]} : vector<8x512xf32> to vector<8x128xf32>
    %189 = arith.negf %188 : vector<8x128xf32>
    %190 = math.exp %189 : vector<8x128xf32>
    %cst_61 = arith.constant 1.000000e+00 : f32
    %191 = vector.broadcast %cst_61 : f32 to vector<8x128xf32>
    %192 = arith.addf %191, %190 : vector<8x128xf32>
    %193 = arith.divf %191, %192 : vector<8x128xf32>
    %194 = vector.extract_strided_slice %181 {offsets = [0, 256], sizes = [8, 128], strides = [1, 1]} : vector<8x512xf32> to vector<8x128xf32>
    %195 = math.tanh %194 : vector<8x128xf32>
    %196 = vector.extract_strided_slice %181 {offsets = [0, 384], sizes = [8, 128], strides = [1, 1]} : vector<8x512xf32> to vector<8x128xf32>
    %197 = arith.negf %196 : vector<8x128xf32>
    %198 = math.exp %197 : vector<8x128xf32>
    %cst_62 = arith.constant 1.000000e+00 : f32
    %199 = vector.broadcast %cst_62 : f32 to vector<8x128xf32>
    %200 = arith.addf %199, %198 : vector<8x128xf32>
    %201 = arith.divf %199, %200 : vector<8x128xf32>
    %202 = arith.mulf %193, %172 : vector<8x128xf32>
    %203 = arith.mulf %187, %195 : vector<8x128xf32>
    %204 = arith.addf %202, %203 : vector<8x128xf32>
    %205 = math.tanh %204 : vector<8x128xf32>
    %206 = arith.mulf %201, %205 : vector<8x128xf32>
    %c6_i32 = arith.constant 6 : i32
    %207 = arith.index_cast %c6_i32 : i32 to index
    %c0_63 = arith.constant 0 : index
    %c0_64 = arith.constant 0 : index
    %208 = vector.load %arg13[%207, %c0_63, %c0_64] : memref<8x8x512xf32, #tpu.memory_space<vmem>>, vector<1x8x512xf32>
    %209 = vector.shape_cast %208 : vector<1x8x512xf32> to vector<8x512xf32>
    %210 = arith.truncf %206 : vector<8x128xf32> to vector<8x128xbf16>
    %c0_65 = arith.constant 0 : index
    %c0_66 = arith.constant 0 : index
    %211 = vector.load %arg4[%c0_65, %c0_66] : memref<128x512xbf16, #tpu.memory_space<vmem>>, vector<128x512xbf16>
    %cst_67 = arith.constant dense<0.000000e+00> : vector<8x512xf32>
    %212 = tpu.matmul %210, %211, %cst_67 {dimension_numbers = #tpu.dot_dimension_numbers<[1], [0], [0], [1], [0, 0, 1, 1], [], []>} : vector<8x128xbf16>, vector<128x512xbf16>, vector<8x512xf32> -> vector<8x512xf32>
    %213 = arith.addf %209, %212 : vector<8x512xf32>
    %214 = vector.extract_strided_slice %213 {offsets = [0, 0], sizes = [8, 128], strides = [1, 1]} : vector<8x512xf32> to vector<8x128xf32>
    %215 = arith.negf %214 : vector<8x128xf32>
    %216 = math.exp %215 : vector<8x128xf32>
    %cst_68 = arith.constant 1.000000e+00 : f32
    %217 = vector.broadcast %cst_68 : f32 to vector<8x128xf32>
    %218 = arith.addf %217, %216 : vector<8x128xf32>
    %219 = arith.divf %217, %218 : vector<8x128xf32>
    %220 = vector.extract_strided_slice %213 {offsets = [0, 128], sizes = [8, 128], strides = [1, 1]} : vector<8x512xf32> to vector<8x128xf32>
    %221 = arith.negf %220 : vector<8x128xf32>
    %222 = math.exp %221 : vector<8x128xf32>
    %cst_69 = arith.constant 1.000000e+00 : f32
    %223 = vector.broadcast %cst_69 : f32 to vector<8x128xf32>
    %224 = arith.addf %223, %222 : vector<8x128xf32>
    %225 = arith.divf %223, %224 : vector<8x128xf32>
    %226 = vector.extract_strided_slice %213 {offsets = [0, 256], sizes = [8, 128], strides = [1, 1]} : vector<8x512xf32> to vector<8x128xf32>
    %227 = math.tanh %226 : vector<8x128xf32>
    %228 = vector.extract_strided_slice %213 {offsets = [0, 384], sizes = [8, 128], strides = [1, 1]} : vector<8x512xf32> to vector<8x128xf32>
    %229 = arith.negf %228 : vector<8x128xf32>
    %230 = math.exp %229 : vector<8x128xf32>
    %cst_70 = arith.constant 1.000000e+00 : f32
    %231 = vector.broadcast %cst_70 : f32 to vector<8x128xf32>
    %232 = arith.addf %231, %230 : vector<8x128xf32>
    %233 = arith.divf %231, %232 : vector<8x128xf32>
    %234 = arith.mulf %225, %204 : vector<8x128xf32>
    %235 = arith.mulf %219, %227 : vector<8x128xf32>
    %236 = arith.addf %234, %235 : vector<8x128xf32>
    %237 = math.tanh %236 : vector<8x128xf32>
    %238 = arith.mulf %233, %237 : vector<8x128xf32>
    %c7_i32 = arith.constant 7 : i32
    %239 = arith.index_cast %c7_i32 : i32 to index
    %c0_71 = arith.constant 0 : index
    %c0_72 = arith.constant 0 : index
    %240 = vector.load %arg13[%239, %c0_71, %c0_72] : memref<8x8x512xf32, #tpu.memory_space<vmem>>, vector<1x8x512xf32>
    %241 = vector.shape_cast %240 : vector<1x8x512xf32> to vector<8x512xf32>
    %242 = arith.truncf %238 : vector<8x128xf32> to vector<8x128xbf16>
    %c0_73 = arith.constant 0 : index
    %c0_74 = arith.constant 0 : index
    %243 = vector.load %arg4[%c0_73, %c0_74] : memref<128x512xbf16, #tpu.memory_space<vmem>>, vector<128x512xbf16>
    %cst_75 = arith.constant dense<0.000000e+00> : vector<8x512xf32>
    %244 = tpu.matmul %242, %243, %cst_75 {dimension_numbers = #tpu.dot_dimension_numbers<[1], [0], [0], [1], [0, 0, 1, 1], [], []>} : vector<8x128xbf16>, vector<128x512xbf16>, vector<8x512xf32> -> vector<8x512xf32>
    %245 = arith.addf %241, %244 : vector<8x512xf32>
    %246 = vector.extract_strided_slice %245 {offsets = [0, 0], sizes = [8, 128], strides = [1, 1]} : vector<8x512xf32> to vector<8x128xf32>
    %247 = arith.negf %246 : vector<8x128xf32>
    %248 = math.exp %247 : vector<8x128xf32>
    %cst_76 = arith.constant 1.000000e+00 : f32
    %249 = vector.broadcast %cst_76 : f32 to vector<8x128xf32>
    %250 = arith.addf %249, %248 : vector<8x128xf32>
    %251 = arith.divf %249, %250 : vector<8x128xf32>
    %252 = vector.extract_strided_slice %245 {offsets = [0, 128], sizes = [8, 128], strides = [1, 1]} : vector<8x512xf32> to vector<8x128xf32>
    %253 = arith.negf %252 : vector<8x128xf32>
    %254 = math.exp %253 : vector<8x128xf32>
    %cst_77 = arith.constant 1.000000e+00 : f32
    %255 = vector.broadcast %cst_77 : f32 to vector<8x128xf32>
    %256 = arith.addf %255, %254 : vector<8x128xf32>
    %257 = arith.divf %255, %256 : vector<8x128xf32>
    %258 = vector.extract_strided_slice %245 {offsets = [0, 256], sizes = [8, 128], strides = [1, 1]} : vector<8x512xf32> to vector<8x128xf32>
    %259 = math.tanh %258 : vector<8x128xf32>
    %260 = vector.extract_strided_slice %245 {offsets = [0, 384], sizes = [8, 128], strides = [1, 1]} : vector<8x512xf32> to vector<8x128xf32>
    %261 = arith.negf %260 : vector<8x128xf32>
    %262 = math.exp %261 : vector<8x128xf32>
    %cst_78 = arith.constant 1.000000e+00 : f32
    %263 = vector.broadcast %cst_78 : f32 to vector<8x128xf32>
    %264 = arith.addf %263, %262 : vector<8x128xf32>
    %265 = arith.divf %263, %264 : vector<8x128xf32>
    %266 = arith.mulf %257, %236 : vector<8x128xf32>
    %267 = arith.mulf %251, %259 : vector<8x128xf32>
    %268 = arith.addf %266, %267 : vector<8x128xf32>
    %269 = math.tanh %268 : vector<8x128xf32>
    %270 = arith.mulf %265, %269 : vector<8x128xf32>
    %c8_i32 = arith.constant 8 : i32
    %c0_79 = arith.constant 0 : index
    %c0_80 = arith.constant 0 : index
    %271 = vector.load %arg11[%c0_79, %c0_80] : memref<8x128xf32, #tpu.memory_space<vmem>>, vector<8x128xf32>
    tpu.vector_store %arg11[%c0_79, %c0_80], %270 {strides = array<i32>} : memref<8x128xf32, #tpu.memory_space<vmem>>, vector<8x128xf32>,
    %c0_81 = arith.constant 0 : index
    %c0_82 = arith.constant 0 : index
    %272 = vector.load %arg12[%c0_81, %c0_82] : memref<8x128xf32, #tpu.memory_space<vmem>>, vector<8x128xf32>
    tpu.vector_store %arg12[%c0_81, %c0_82], %268 {strides = array<i32>} : memref<8x128xf32, #tpu.memory_space<vmem>>, vector<8x128xf32>,
    %c0_i32_83 = arith.constant 0 : i32
    %273 = arith.cmpi eq, %arg1, %c0_i32_83 : i32
    %274 = arith.extui %273 : i1 to i32
    %c0_i32_84 = arith.constant 0 : i32
    %275 = arith.cmpi ne, %274, %c0_i32_84 : i32
    scf.if %275 {
      %c0_85 = arith.constant 0 : index
      %c0_86 = arith.constant 0 : index
      %276 = vector.load %arg6[%c0_85, %c0_86] : memref<128x128xf32, #tpu.memory_space<vmem>>, vector<128x128xf32>
      %cst_87 = arith.constant dense<0.000000e+00> : vector<8x128xf32>
      %277 = tpu.matmul %270, %276, %cst_87 {dimension_numbers = #tpu.dot_dimension_numbers<[1], [0], [0], [1], [0, 0, 1, 1], [], []>} : vector<8x128xf32>, vector<128x128xf32>, vector<8x128xf32> -> vector<8x128xf32>
      %c0_88 = arith.constant 0 : index
      %c0_89 = arith.constant 0 : index
      %278 = vector.load %arg7[%c0_88, %c0_89] : memref<1x128xf32, #tpu.memory_space<vmem>>, vector<1x128xf32>
      %279 = vector.broadcast %278 : vector<1x128xf32> to vector<8x128xf32>
      %280 = arith.addf %277, %279 : vector<8x128xf32>
      %cst_90 = arith.constant 0.000000e+00 : f32
      %281 = vector.broadcast %cst_90 : f32 to vector<8x128xf32>
      %282 = arith.maximumf %280, %281 : vector<8x128xf32>
      %c0_91 = arith.constant 0 : index
      %c0_92 = arith.constant 0 : index
      %283 = vector.load %arg8[%c0_91, %c0_92] : memref<128x128xf32, #tpu.memory_space<vmem>>, vector<128x128xf32>
      %cst_93 = arith.constant dense<0.000000e+00> : vector<8x128xf32>
      %284 = tpu.matmul %282, %283, %cst_93 {dimension_numbers = #tpu.dot_dimension_numbers<[1], [0], [0], [1], [0, 0, 1, 1], [], []>} : vector<8x128xf32>, vector<128x128xf32>, vector<8x128xf32> -> vector<8x128xf32>
      %c0_94 = arith.constant 0 : index
      %c0_95 = arith.constant 0 : index
      %285 = vector.load %arg9[%c0_94, %c0_95] : memref<1x128xf32, #tpu.memory_space<vmem>>, vector<1x128xf32>
      %286 = vector.broadcast %285 : vector<1x128xf32> to vector<8x128xf32>
      %287 = arith.addf %284, %286 : vector<8x128xf32>
      %c0_96 = arith.constant 0 : index
      %c0_97 = arith.constant 0 : index
      %288 = vector.load %arg10[%c0_96, %c0_97] : memref<8x128xf32, #tpu.memory_space<vmem>>, vector<8x128xf32>
      tpu.vector_store %arg10[%c0_96, %c0_97], %287 {strides = array<i32>} : memref<8x128xf32, #tpu.memory_space<vmem>>, vector<8x128xf32>,
    } else {
    }
    return
  }
  func.func @transform_0(%arg0: i32, %arg1: i32) -> (i32, i32, i32) {
    %c0_i32 = arith.constant 0 : i32
    %c0_i32_0 = arith.constant 0 : i32
    return %arg1, %arg0, %c0_i32 : i32, i32, i32
  }
  func.func @transform_1(%arg0: i32, %arg1: i32) -> (i32, i32) {
    %c0_i32 = arith.constant 0 : i32
    %c0_i32_0 = arith.constant 0 : i32
    %c0_i32_1 = arith.constant 0 : i32
    return %c0_i32, %c0_i32_0 : i32, i32
  }
  func.func @transform_2(%arg0: i32, %arg1: i32) -> (i32, i32) {
    %c0_i32 = arith.constant 0 : i32
    %c0_i32_0 = arith.constant 0 : i32
    %c0_i32_1 = arith.constant 0 : i32
    return %c0_i32, %c0_i32_0 : i32, i32
  }
  func.func @transform_3(%arg0: i32, %arg1: i32) -> (i32, i32) {
    %c0_i32 = arith.constant 0 : i32
    %c0_i32_0 = arith.constant 0 : i32
    %c0_i32_1 = arith.constant 0 : i32
    return %c0_i32, %c0_i32_0 : i32, i32
  }
  func.func @transform_4(%arg0: i32, %arg1: i32) -> (i32, i32) {
    %c0_i32 = arith.constant 0 : i32
    %c0_i32_0 = arith.constant 0 : i32
    %c0_i32_1 = arith.constant 0 : i32
    return %c0_i32, %c0_i32_0 : i32, i32
  }
  func.func @transform_5(%arg0: i32, %arg1: i32) -> (i32, i32) {
    %c0_i32 = arith.constant 0 : i32
    %c0_i32_0 = arith.constant 0 : i32
    %c0_i32_1 = arith.constant 0 : i32
    return %c0_i32, %c0_i32_0 : i32, i32
  }
  func.func @transform_6(%arg0: i32, %arg1: i32) -> (i32, i32) {
    %c0_i32 = arith.constant 0 : i32
    %c0_i32_0 = arith.constant 0 : i32
    %c0_i32_1 = arith.constant 0 : i32
    return %c0_i32, %c0_i32_0 : i32, i32
  }
  func.func @transform_7(%arg0: i32, %arg1: i32) -> (i32, i32) {
    %c0_i32 = arith.constant 0 : i32
    %c0_i32_0 = arith.constant 0 : i32
    %c0_i32_1 = arith.constant 0 : i32
    return %c0_i32, %c0_i32_0 : i32, i32
  }
  func.func @transform_8(%arg0: i32, %arg1: i32) -> (i32, i32) {
    %c0_i32 = arith.constant 0 : i32
    %c0_i32_0 = arith.constant 0 : i32
    return %arg0, %c0_i32 : i32, i32
  }
}

</mosaic_0001>

<llo_original>
// kernel: tpu_custom_call.1
$region0: #{tpu_custom_call.1}
  #allocation0 [shape = 'u32[]', space=smem, size = 0x4, offset = 0x4, fixed_abs, tag = 'smem constant byte address 0x4 - core index']
  #allocation1 [shape = 'u32[144,128]{1,0:T(1,128)}', space=vmem, size = 0x12000, scoped, tag = 'internal scratch']
  #allocation2 [shape = 'f32[8,128]{1,0:T(8,128)}', space=vmem, size = 0x1000, scoped, tag = 'scratch operand']
  #allocation3 [shape = 'f32[8,128]{1,0:T(8,128)}', space=vmem, size = 0x1000, scoped, tag = 'scratch operand']
  #allocation4 [shape = 'f32[8,8,512]{2,1,0:T(8,128)}', space=vmem, size = 0x20000, scoped, tag = 'scratch operand']
  %s0 = inlined_call_operand.hbm [shape: f32[8,8,16], index: 0, kind: input, shape index: {}]
  %s1 = inlined_call_operand.hbm [shape: bf16[16,512], index: 1, kind: input, shape index: {}]
  %s2 = inlined_call_operand.hbm [shape: bf16[128,512], index: 2, kind: input, shape index: {}]
  %s3 = inlined_call_operand.vmem [shape: f32[1,512], index: 3, kind: input, shape index: {}]
  %s4 = inlined_call_operand.hbm [shape: f32[128,128], index: 4, kind: input, shape index: {}]
  %s5 = inlined_call_operand.vmem [shape: f32[1,128], index: 5, kind: input, shape index: {}]
  %s6 = inlined_call_operand.hbm [shape: f32[128,128], index: 6, kind: input, shape index: {}]
  %s7 = inlined_call_operand.vmem [shape: f32[1,128], index: 7, kind: input, shape index: {}]
  %s8 = inlined_call_operand.hbm [shape: f32[8,128], index: 8, kind: output, shape index: {}]
  %s9 = sld [smem:[#allocation0]]
  $region70: #{tpu_custom_call.1} parent=0
    _
  %s11 = ssub.s32 1, %s9
  %s12 = scalar_select 0, %s11, %s9
  $region1: #{tpu_custom_call.1} parent=0
    #allocation5 [shape = 'u8[32768]{0}', space=vmem, size = 0x8000, scoped, tag = 'input window, operand 0, single buffered']
    #allocation6 [shape = 's32[1]{0}', space=sflag, size = 0x4, scoped, tag = 'scoped memory for tpu_custom_call.1']
    #allocation7 [shape = 's32[1]{0}', space=sflag, size = 0x4, scoped, tag = 'scoped memory for tpu_custom_call.1']
    #allocation8 [shape = 'u8[16384]{0}', space=vmem, size = 0x4000, scoped, tag = 'input window, operand 1, single buffered']
    #allocation9 [shape = 's32[1]{0}', space=sflag, size = 0x4, scoped, tag = 'scoped memory for tpu_custom_call.1']
    #allocation10 [shape = 'u8[131072]{0}', space=vmem, size = 0x20000, scoped, tag = 'input window, operand 2, single buffered']
    #allocation11 [shape = 'u8[65536]{0}', space=vmem, size = 0x10000, scoped, tag = 'input window, operand 4, single buffered']
    #allocation12 [shape = 's32[1]{0}', space=sflag, size = 0x4, scoped, tag = 'scoped memory for tpu_custom_call.1']
    #allocation13 [shape = 'u8[65536]{0}', space=vmem, size = 0x10000, scoped, tag = 'input window, operand 6, single buffered']
    #allocation14 [shape = 'u8[4096]{0}', space=vmem, size = 0x1000, scoped, tag = 'output window, operand 0, single buffered']
    %13 = vsyncpa [#allocation6], 0
    %14 = vsyncpa [#allocation9], 0
    %15 = vsyncpa [#allocation12], 0
    %16 = vsyncpa [#allocation7], 0
    // Predicated region
    $region2: #{tpu_custom_call.1} parent=1 // pred_check
      _
    $region3: #{tpu_custom_call.1} parent=1 // pred_check_branch
      %18 = sbr.rel (0) target = $region5
    $region4: #{tpu_custom_call.1} parent=1 // pred_region
      %s20 = ssub.s32 1024, 1024
      %21 = vsyncadd [#allocation6], %s20
      %s22 = sshll.u32 [#allocation5], 4
      %s23 = int_to_ptr.vmem [resolvable:$true] %s22
      %28 = dma.hbm_to_vmem [thread:$0]  %s0, 1024, %s23, [#allocation6], 128, 128, 8
    $region5: #{tpu_custom_call.1} parent=1 // pred_fallthru
      _
    // Predicated region
    $region6: #{tpu_custom_call.1} parent=1 // pred_check
      _
    $region7: #{tpu_custom_call.1} parent=1 // pred_check_branch
      %30 = sbr.rel (0) target = $region9
    $region8: #{tpu_custom_call.1} parent=1 // pred_region
      %s32 = ssub.s32 512, 512
      %33 = vsyncadd [#allocation9], %s32
      %s34 = sshll.u32 [#allocation8], 4
      %s35 = int_to_ptr.vmem [resolvable:$true] %s34
      %40 = dma.hbm_to_vmem [thread:$0]  %s1, 512, %s35, [#allocation9], 256, 256, 16
    $region9: #{tpu_custom_call.1} parent=1 // pred_fallthru
      _
    // Predicated region
    $region10: #{tpu_custom_call.1} parent=1 // pred_check
      _
    $region11: #{tpu_custom_call.1} parent=1 // pred_check_branch
      %42 = sbr.rel (0) target = $region13
    $region12: #{tpu_custom_call.1} parent=1 // pred_region
      %s44 = ssub.s32 4096, 4096
      %45 = vsyncadd [#allocation9], %s44
      %s46 = sshll.u32 [#allocation10], 4
      %s47 = int_to_ptr.vmem [resolvable:$true] %s46
      %52 = dma.hbm_to_vmem [thread:$0]  %s2, 4096, %s47, [#allocation9], 256, 256, 16
    $region13: #{tpu_custom_call.1} parent=1 // pred_fallthru
      _
    // Predicated region
    $region14: #{tpu_custom_call.1} parent=1 // pred_check
      _
    $region15: #{tpu_custom_call.1} parent=1 // pred_check_branch
      %54 = sbr.rel (0) target = $region17
    $region16: #{tpu_custom_call.1} parent=1 // pred_region
      _
    $region17: #{tpu_custom_call.1} parent=1 // pred_fallthru
      _
    // Predicated region
    $region18: #{tpu_custom_call.1} parent=1 // pred_check
      _
    $region19: #{tpu_custom_call.1} parent=1 // pred_check_branch
      %56 = sbr.rel (0) target = $region21
    $region20: #{tpu_custom_call.1} parent=1 // pred_region
      %s58 = ssub.s32 2048, 2048
      %59 = vsyncadd [#allocation12], %s58
      %s60 = sshll.u32 [#allocation11], 4
      %s61 = int_to_ptr.vmem [resolvable:$true] %s60
      %66 = dma.hbm_to_vmem [thread:$0]  %s4, 2048, %s61, [#allocation12], 128, 128, 8
    $region21: #{tpu_custom_call.1} parent=1 // pred_fallthru
      _
    // Predicated region
    $region22: #{tpu_custom_call.1} parent=1 // pred_check
      _
    $region23: #{tpu_custom_call.1} parent=1 // pred_check_branch
      %68 = sbr.rel (0) target = $region25
    $region24: #{tpu_custom_call.1} parent=1 // pred_region
      _
    $region25: #{tpu_custom_call.1} parent=1 // pred_fallthru
      _
    // Predicated region
    $region26: #{tpu_custom_call.1} parent=1 // pred_check
      _
    $region27: #{tpu_custom_call.1} parent=1 // pred_check_branch
      %70 = sbr.rel (0) target = $region29
    $region28: #{tpu_custom_call.1} parent=1 // pred_region
      %s72 = ssub.s32 2048, 2048
      %73 = vsyncadd [#allocation12], %s72
      %s74 = sshll.u32 [#allocation13], 4
      %s75 = int_to_ptr.vmem [resolvable:$true] %s74
      %80 = dma.hbm_to_vmem [thread:$0]  %s6, 2048, %s75, [#allocation12], 128, 128, 8
    $region29: #{tpu_custom_call.1} parent=1 // pred_fallthru
      _
    // Predicated region
    $region30: #{tpu_custom_call.1} parent=1 // pred_check
      _
    $region31: #{tpu_custom_call.1} parent=1 // pred_check_branch
      %82 = sbr.rel (0) target = $region33
    $region32: #{tpu_custom_call.1} parent=1 // pred_region
      _
    $region33: #{tpu_custom_call.1} parent=1 // pred_fallthru
      _
    // Predicated region
    $region34: #{tpu_custom_call.1} parent=1 // pred_check
      _
    $region35: #{tpu_custom_call.1} parent=1 // pred_check_branch
      %84 = sbr.rel (0) target = $region37
    $region36: #{tpu_custom_call.1} parent=1 // pred_region
      %85 = dma.done [#allocation6], 1024
    $region37: #{tpu_custom_call.1} parent=1 // pred_fallthru
      _
    // Predicated region
    $region38: #{tpu_custom_call.1} parent=1 // pred_check
      _
    $region39: #{tpu_custom_call.1} parent=1 // pred_check_branch
      %87 = sbr.rel (0) target = $region41
    $region40: #{tpu_custom_call.1} parent=1 // pred_region
      %88 = dma.done [#allocation9], 512
    $region41: #{tpu_custom_call.1} parent=1 // pred_fallthru
      _
    // Predicated region
    $region42: #{tpu_custom_call.1} parent=1 // pred_check
      _
    $region43: #{tpu_custom_call.1} parent=1 // pred_check_branch
      %90 = sbr.rel (0) target = $region45
    $region44: #{tpu_custom_call.1} parent=1 // pred_region
      %91 = dma.done [#allocation9], 4096
    $region45: #{tpu_custom_call.1} parent=1 // pred_fallthru
      _
    // Predicated region
    $region46: #{tpu_custom_call.1} parent=1 // pred_check
      _
    $region47: #{tpu_custom_call.1} parent=1 // pred_check_branch
      %93 = sbr.rel (0) target = $region49
    $region48: #{tpu_custom_call.1} parent=1 // pred_region
      %94 = dma.done [#allocation12], 2048
    $region49: #{tpu_custom_call.1} parent=1 // pred_fallthru
      _
    // Predicated region
    $region50: #{tpu_custom_call.1} parent=1 // pred_check
      _
    $region51: #{tpu_custom_call.1} parent=1 // pred_check_branch
      %96 = sbr.rel (0) target = $region53
    $region52: #{tpu_custom_call.1} parent=1 // pred_region
      %97 = dma.done [#allocation12], 2048
    $region53: #{tpu_custom_call.1} parent=1 // pred_fallthru
      _
    %p99 = scmp.eq.s32.totalorder 0, 0
    // Predicated region
    $region54: #{tpu_custom_call.1} parent=1 // pred_check
      %p100 = pneg %p99
    $region55: #{tpu_custom_call.1} parent=1 // pred_check_branch
      %102 = sbr.rel (%p100) target = $region57
    $region56: #{tpu_custom_call.1} parent=1 // pred_region
      %103 = vst [vmem:[#allocation2] sm:$0xff] 0.0
      %104 = vst [vmem:[#allocation3] sm:$0xff] 0.0
    $region57: #{tpu_custom_call.1} parent=1 // pred_fallthru
      _
    %v105 = vld [vmem:[#allocation5] sm:$0xff]
    %v106 = vld [vmem:[#allocation5 + $0x8] sm:$0xff]
    %v107 = vld [vmem:[#allocation5 + $0x10] sm:$0xff]
    %v108 = vld [vmem:[#allocation5 + $0x18] sm:$0xff]
    %v109 = vld [vmem:[#allocation5 + $0x20] sm:$0xff]
    %v110 = vld [vmem:[#allocation5 + $0x28] sm:$0xff]
    %v111 = vld [vmem:[#allocation5 + $0x30] sm:$0xff]
    %v112 = vld [vmem:[#allocation5 + $0x38] sm:$0xff]
    %v113 = vpack.c.bf16 %v106, %v105
    %v114 = vpack.c.bf16 %v108, %v107
    %v115 = vpack.c.bf16 %v110, %v109
    %v116 = vpack.c.bf16 %v112, %v111
    %v117 = vld [vmem:[#allocation8] sm:$0xff]
    %v118 = vld [vmem:[#allocation8 + $0x8] sm:$0xff]
    %v119 = vld [vmem:[#allocation8 + $0x10] sm:$0xff]
    %v120 = vld [vmem:[#allocation8 + $0x18] sm:$0xff]
    %v121 = vld [vmem:[%s3] sm:$0xf]
    %v123 = vlaneseq
    %v124 = vshrl.u32 %v123, 7
    %v125 = vsub.s32 0, %v124
    %v126 = vrot.slane %v121, %v125
    %v127 = vlaneseq
    %v128 = vshrl.u32 %v127, 7
    %v129 = vsub.s32 1, %v128
    %v130 = vrot.slane %v121, %v129
    %v131 = vlaneseq
    %v132 = vshrl.u32 %v131, 7
    %v133 = vsub.s32 2, %v132
    %v134 = vrot.slane %v121, %v133
    %v135 = vlaneseq
    %v136 = vshrl.u32 %v135, 7
    %v137 = vsub.s32 3, %v136
    %v138 = vrot.slane %v121, %v137
    %v147 = vunpack.c.l.b16 %v117
    %v148 = vunpack.c.h.b16 %v117
    %v149 = vunpack.c.l.b16 %v118
    %v150 = vunpack.c.h.b16 %v118
    %v151 = vunpack.c.l.b16 %v119
    %v152 = vunpack.c.h.b16 %v119
    %v153 = vunpack.c.l.b16 %v120
    %v154 = vunpack.c.h.b16 %v120
    %v155 = vpack.c.b16 %v151, %v147
    %v156 = vpack.c.b16 %v152, %v148
    %v157 = vpack.c.b16 %v153, %v149
    %v158 = vpack.c.b16 %v154, %v150
    %vm163 = vcmask 130048
    %v165 = vsel %vm163, %v113, 0
    %v168 = vsel %vm163, %v114, 0
    %v171 = vsel %vm163, %v115, 0
    %v174 = vsel %vm163, %v116, 0
    %176 = vmatprep.subr.bf16.mxu0 %v156
    %177 = vmatpush1.bf16.msra.mxu0 %v155
    %178 = vmatprep.subr.bf16.mxu0 0
    %179 = vmatpush1.bf16.msra.mxu0 0
    %180 = vmatprep.subr.bf16.mxu0 0
    %181 = vmatpush1.bf16.msra.mxu0 0
    %182 = vmatprep.subr.bf16.mxu0 0
    %183 = vmatpush1.bf16.msra.mxu0 0
    %184 = vmatprep.subr.bf16.mxu0 0
    %185 = vmatpush1.bf16.msra.mxu0 0
    %186 = vmatprep.subr.bf16.mxu0 0
    %187 = vmatpush1.bf16.msra.mxu0 0
    %188 = vmatprep.subr.bf16.mxu0 0
    %189 = vmatpush1.bf16.msra.mxu0 0
    %190 = vmatprep.subr.bf16.mxu0 0
    %191 = vmatpush1.bf16.msra.mxu0 0
    %192 = vmatprep.subr.bf16.mxu0 0
    %193 = vmatpush1.bf16.msra.mxu0 0
    %194 = vmatprep.subr.bf16.mxu0 0
    %195 = vmatpush1.bf16.msra.mxu0 0
    %196 = vmatprep.subr.bf16.mxu0 0
    %197 = vmatpush1.bf16.msra.mxu0 0
    %198 = vmatprep.subr.bf16.mxu0 0
    %199 = vmatpush1.bf16.msra.mxu0 0
    %200 = vmatprep.subr.bf16.mxu0 0
    %201 = vmatpush1.bf16.msra.mxu0 0
    %202 = vmatprep.subr.bf16.mxu0 0
    %203 = vmatpush1.bf16.msra.mxu0 0
    %204 = vmatprep.subr.bf16.mxu0 0
    %205 = vmatpush1.bf16.msra.mxu0 0
    %206 = vmatprep.subr.bf16.mxu0 0
    %207 = vmatpush1.bf16.msra.mxu0 0
    %208 = vmatprep.mubr.bf16.mxu0 0
    %209 = vmatmul.mubr.bf16.gmra.mrb[0].mxu0 %v165
    %v210 = vpop.f32.mrb[0].mxu0
    %v211 = vadd.f32 %v126, %v210
    %v212 = vpop.f32.mrb[0].mxu0
    %v213 = vadd.f32 %v130, %v212
    %v214 = vpop.f32.mrb[0].mxu0
    %v215 = vadd.f32 %v126, %v214
    %v216 = vpop.f32.mrb[0].mxu0
    %v217 = vadd.f32 %v130, %v216
    %218 = vmatprep.mubr.bf16.mxu0 0
    %219 = vmatmul.mubr.bf16.gmra.mrb[0].mxu0 %v168
    %v220 = vpop.f32.mrb[0].mxu0
    %v221 = vadd.f32 %v126, %v220
    %v222 = vpop.f32.mrb[0].mxu0
    %v223 = vadd.f32 %v130, %v222
    %v224 = vpop.f32.mrb[0].mxu0
    %v225 = vadd.f32 %v126, %v224
    %v226 = vpop.f32.mrb[0].mxu0
    %v227 = vadd.f32 %v130, %v226
    %228 = vmatprep.mubr.bf16.mxu0 0
    %229 = vmatmul.mubr.bf16.gmra.mrb[0].mxu0 %v171
    %v230 = vpop.f32.mrb[0].mxu0
    %v231 = vadd.f32 %v126, %v230
    %v232 = vpop.f32.mrb[0].mxu0
    %v233 = vadd.f32 %v130, %v232
    %v234 = vpop.f32.mrb[0].mxu0
    %v235 = vadd.f32 %v126, %v234
    %v236 = vpop.f32.mrb[0].mxu0
    %v237 = vadd.f32 %v130, %v236
    %238 = vmatprep.mubr.bf16.mxu0 0
    %239 = vmatmul.mubr.bf16.gmra.mrb[0].mxu0 %v174
    %v240 = vpop.f32.mrb[0].mxu0
    %v241 = vadd.f32 %v126, %v240
    %v242 = vpop.f32.mrb[0].mxu0
    %v243 = vadd.f32 %v130, %v242
    %v244 = vpop.f32.mrb[0].mxu0
    %v245 = vadd.f32 %v126, %v244
    %v246 = vpop.f32.mrb[0].mxu0
    %v247 = vadd.f32 %v130, %v246
    %248 = vdwg.mxu0
    %249 = vmatprep.subr.bf16.mxu0 %v158
    %250 = vmatpush1.bf16.msra.mxu0 %v157
    %251 = vmatprep.subr.bf16.mxu0 0
    %252 = vmatpush1.bf16.msra.mxu0 0
    %253 = vmatprep.subr.bf16.mxu0 0
    %254 = vmatpush1.bf16.msra.mxu0 0
    %255 = vmatprep.subr.bf16.mxu0 0
    %256 = vmatpush1.bf16.msra.mxu0 0
    %257 = vmatprep.subr.bf16.mxu0 0
    %258 = vmatpush1.bf16.msra.mxu0 0
    %259 = vmatprep.subr.bf16.mxu0 0
    %260 = vmatpush1.bf16.msra.mxu0 0
    %261 = vmatprep.subr.bf16.mxu0 0
    %262 = vmatpush1.bf16.msra.mxu0 0
    %263 = vmatprep.subr.bf16.mxu0 0
    %264 = vmatpush1.bf16.msra.mxu0 0
    %265 = vmatprep.subr.bf16.mxu0 0
    %266 = vmatpush1.bf16.msra.mxu0 0
    %267 = vmatprep.subr.bf16.mxu0 0
    %268 = vmatpush1.bf16.msra.mxu0 0
    %269 = vmatprep.subr.bf16.mxu0 0
    %270 = vmatpush1.bf16.msra.mxu0 0
    %271 = vmatprep.subr.bf16.mxu0 0
    %272 = vmatpush1.bf16.msra.mxu0 0
    %273 = vmatprep.subr.bf16.mxu0 0
    %274 = vmatpush1.bf16.msra.mxu0 0
    %275 = vmatprep.subr.bf16.mxu0 0
    %276 = vmatpush1.bf16.msra.mxu0 0
    %277 = vmatprep.subr.bf16.mxu0 0
    %278 = vmatpush1.bf16.msra.mxu0 0
    %279 = vmatprep.subr.bf16.mxu0 0
    %280 = vmatpush1.bf16.msra.mxu0 0
    %281 = vmatprep.mubr.bf16.mxu0 0
    %282 = vmatmul.mubr.bf16.gmra.mrb[0].mxu0 %v165
    %v283 = vpop.f32.mrb[0].mxu0
    %v284 = vadd.f32 %v134, %v283
    %v285 = vpop.f32.mrb[0].mxu0
    %v286 = vadd.f32 %v138, %v285
    %v287 = vpop.f32.mrb[0].mxu0
    %v288 = vadd.f32 %v134, %v287
    %v289 = vpop.f32.mrb[0].mxu0
    %v290 = vadd.f32 %v138, %v289
    %291 = vmatprep.mubr.bf16.mxu0 0
    %292 = vmatmul.mubr.bf16.gmra.mrb[0].mxu0 %v168
    %v293 = vpop.f32.mrb[0].mxu0
    %v294 = vadd.f32 %v134, %v293
    %v295 = vpop.f32.mrb[0].mxu0
    %v296 = vadd.f32 %v138, %v295
    %v297 = vpop.f32.mrb[0].mxu0
    %v298 = vadd.f32 %v134, %v297
    %v299 = vpop.f32.mrb[0].mxu0
    %v300 = vadd.f32 %v138, %v299
    %301 = vmatprep.mubr.bf16.mxu0 0
    %302 = vmatmul.mubr.bf16.gmra.mrb[0].mxu0 %v171
    %v303 = vpop.f32.mrb[0].mxu0
    %v304 = vadd.f32 %v134, %v303
    %v305 = vpop.f32.mrb[0].mxu0
    %v306 = vadd.f32 %v138, %v305
    %v307 = vpop.f32.mrb[0].mxu0
    %v308 = vadd.f32 %v134, %v307
    %v309 = vpop.f32.mrb[0].mxu0
    %v310 = vadd.f32 %v138, %v309
    %311 = vmatprep.mubr.bf16.mxu0 0
    %312 = vmatmul.mubr.bf16.gmra.mrb[0].mxu0 %v174
    %v313 = vpop.f32.mrb[0].mxu0
    %v314 = vadd.f32 %v134, %v313
    %v315 = vpop.f32.mrb[0].mxu0
    %v316 = vadd.f32 %v138, %v315
    %v317 = vpop.f32.mrb[0].mxu0
    %v318 = vadd.f32 %v134, %v317
    %v319 = vpop.f32.mrb[0].mxu0
    %v320 = vadd.f32 %v138, %v319
    %321 = vdwg.mxu0
    %322 = vst [vmem:[#allocation4] sm:$0xff] %v211
    %323 = vst [vmem:[#allocation4 + $0x8] sm:$0xff] %v213
    %324 = vst [vmem:[#allocation4 + $0x10] sm:$0xff] %v284
    %325 = vst [vmem:[#allocation4 + $0x18] sm:$0xff] %v286
    %326 = vst [vmem:[#allocation4 + $0x20] sm:$0xff] %v215
    %327 = vst [vmem:[#allocation4 + $0x28] sm:$0xff] %v217
    %328 = vst [vmem:[#allocation4 + $0x30] sm:$0xff] %v288
    %329 = vst [vmem:[#allocation4 + $0x38] sm:$0xff] %v290
    %330 = vst [vmem:[#allocation4 + $0x40] sm:$0xff] %v221
    %331 = vst [vmem:[#allocation4 + $0x48] sm:$0xff] %v223
    %332 = vst [vmem:[#allocation4 + $0x50] sm:$0xff] %v294
    %333 = vst [vmem:[#allocation4 + $0x58] sm:$0xff] %v296
    %334 = vst [vmem:[#allocation4 + $0x60] sm:$0xff] %v225
    %335 = vst [vmem:[#allocation4 + $0x68] sm:$0xff] %v227
    %336 = vst [vmem:[#allocation4 + $0x70] sm:$0xff] %v298
    %337 = vst [vmem:[#allocation4 + $0x78] sm:$0xff] %v300
    %338 = vst [vmem:[#allocation4 + $0x80] sm:$0xff] %v231
    %339 = vst [vmem:[#allocation4 + $0x88] sm:$0xff] %v233
    %340 = vst [vmem:[#allocation4 + $0x90] sm:$0xff] %v304
    %341 = vst [vmem:[#allocation4 + $0x98] sm:$0xff] %v306
    %342 = vst [vmem:[#allocation4 + $0xa0] sm:$0xff] %v235
    %343 = vst [vmem:[#allocation4 + $0xa8] sm:$0xff] %v237
    %344 = vst [vmem:[#allocation4 + $0xb0] sm:$0xff] %v308
    %345 = vst [vmem:[#allocation4 + $0xb8] sm:$0xff] %v310
    %346 = vst [vmem:[#allocation4 + $0xc0] sm:$0xff] %v241
    %347 = vst [vmem:[#allocation4 + $0xc8] sm:$0xff] %v243
    %348 = vst [vmem:[#allocation4 + $0xd0] sm:$0xff] %v314
    %349 = vst [vmem:[#allocation4 + $0xd8] sm:$0xff] %v316
    %350 = vst [vmem:[#allocation4 + $0xe0] sm:$0xff] %v245
    %351 = vst [vmem:[#allocation4 + $0xe8] sm:$0xff] %v247
    %352 = vst [vmem:[#allocation4 + $0xf0] sm:$0xff] %v318
    %353 = vst [vmem:[#allocation4 + $0xf8] sm:$0xff] %v320
    %v354 = vld [vmem:[#allocation2] sm:$0xff]
    %v355 = vld [vmem:[#allocation3] sm:$0xff]
    %v356 = vld [vmem:[#allocation4] sm:$0xff]
    %v357 = vld [vmem:[#allocation4 + $0x8] sm:$0xff]
    %v358 = vld [vmem:[#allocation4 + $0x10] sm:$0xff]
    %v359 = vld [vmem:[#allocation4 + $0x18] sm:$0xff]
    %v360 = vpack.c.bf16 %v354, %v354
    %v361 = vld [vmem:[#allocation10] sm:$0xff]
    %v362 = vld [vmem:[#allocation10 + $0x8] sm:$0xff]
    %v363 = vld [vmem:[#allocation10 + $0x10] sm:$0xff]
    %v364 = vld [vmem:[#allocation10 + $0x18] sm:$0xff]
    %v365 = vld [vmem:[#allocation10 + $0x20] sm:$0xff]
    %v366 = vld [vmem:[#allocation10 + $0x28] sm:$0xff]
    %v367 = vld [vmem:[#allocation10 + $0x30] sm:$0xff]
    %v368 = vld [vmem:[#allocation10 + $0x38] sm:$0xff]
    %v369 = vld [vmem:[#allocation10 + $0x40] sm:$0xff]
    %v370 = vld [vmem:[#allocation10 + $0x48] sm:$0xff]
    %v371 = vld [vmem:[#allocation10 + $0x50] sm:$0xff]
    %v372 = vld [vmem:[#allocation10 + $0x58] sm:$0xff]
    %v373 = vld [vmem:[#allocation10 + $0x60] sm:$0xff]
    %v374 = vld [vmem:[#allocation10 + $0x68] sm:$0xff]
    %v375 = vld [vmem:[#allocation10 + $0x70] sm:$0xff]
    %v376 = vld [vmem:[#allocation10 + $0x78] sm:$0xff]
    %v377 = vld [vmem:[#allocation10 + $0x80] sm:$0xff]
    %v378 = vld [vmem:[#allocation10 + $0x88] sm:$0xff]
    %v379 = vld [vmem:[#allocation10 + $0x90] sm:$0xff]
    %v380 = vld [vmem:[#allocation10 + $0x98] sm:$0xff]
    %v381 = vld [vmem:[#allocation10 + $0xa0] sm:$0xff]
    %v382 = vld [vmem:[#allocation10 + $0xa8] sm:$0xff]
    %v383 = vld [vmem:[#allocation10 + $0xb0] sm:$0xff]
    %v384 = vld [vmem:[#allocation10 + $0xb8] sm:$0xff]
    %v385 = vld [vmem:[#allocation10 + $0xc0] sm:$0xff]
    %v386 = vld [vmem:[#allocation10 + $0xc8] sm:$0xff]
    %v387 = vld [vmem:[#allocation10 + $0xd0] sm:$0xff]
    %v388 = vld [vmem:[#allocation10 + $0xd8] sm:$0xff]
    %v389 = vld [vmem:[#allocation10 + $0xe0] sm:$0xff]
    %v390 = vld [vmem:[#allocation10 + $0xe8] sm:$0xff]
    %v391 = vld [vmem:[#allocation10 + $0xf0] sm:$0xff]
    %v392 = vld [vmem:[#allocation10 + $0xf8] sm:$0xff]
    %v425 = vunpack.c.l.b16 %v361
    %v426 = vunpack.c.h.b16 %v361
    %v427 = vunpack.c.l.b16 %v362
    %v428 = vunpack.c.h.b16 %v362
    %v429 = vunpack.c.l.b16 %v363
    %v430 = vunpack.c.h.b16 %v363
    %v431 = vunpack.c.l.b16 %v364
    %v432 = vunpack.c.h.b16 %v364
    %v433 = vunpack.c.l.b16 %v365
    %v434 = vunpack.c.h.b16 %v365
    %v435 = vunpack.c.l.b16 %v366
    %v436 = vunpack.c.h.b16 %v366
    %v437 = vunpack.c.l.b16 %v367
    %v438 = vunpack.c.h.b16 %v367
    %v439 = vunpack.c.l.b16 %v368
    %v440 = vunpack.c.h.b16 %v368
    %v441 = vunpack.c.l.b16 %v369
    %v442 = vunpack.c.h.b16 %v369
    %v443 = vunpack.c.l.b16 %v370
    %v444 = vunpack.c.h.b16 %v370
    %v445 = vunpack.c.l.b16 %v371
    %v446 = vunpack.c.h.b16 %v371
    %v447 = vunpack.c.l.b16 %v372
    %v448 = vunpack.c.h.b16 %v372
    %v449 = vunpack.c.l.b16 %v373
    %v450 = vunpack.c.h.b16 %v373
    %v451 = vunpack.c.l.b16 %v374
    %v452 = vunpack.c.h.b16 %v374
    %v453 = vunpack.c.l.b16 %v375
    %v454 = vunpack.c.h.b16 %v375
    %v455 = vunpack.c.l.b16 %v376
    %v456 = vunpack.c.h.b16 %v376
    %v457 = vunpack.c.l.b16 %v377
    %v458 = vunpack.c.h.b16 %v377
    %v459 = vunpack.c.l.b16 %v378
    %v460 = vunpack.c.h.b16 %v378
    %v461 = vunpack.c.l.b16 %v379
    %v462 = vunpack.c.h.b16 %v379
    %v463 = vunpack.c.l.b16 %v380
    %v464 = vunpack.c.h.b16 %v380
    %v465 = vunpack.c.l.b16 %v381
    %v466 = vunpack.c.h.b16 %v381
    %v467 = vunpack.c.l.b16 %v382
    %v468 = vunpack.c.h.b16 %v382
    %v469 = vunpack.c.l.b16 %v383
    %v470 = vunpack.c.h.b16 %v383
    %v471 = vunpack.c.l.b16 %v384
    %v472 = vunpack.c.h.b16 %v384
    %v473 = vunpack.c.l.b16 %v385
    %v474 = vunpack.c.h.b16 %v385
    %v475 = vunpack.c.l.b16 %v386
    %v476 = vunpack.c.h.b16 %v386
    %v477 = vunpack.c.l.b16 %v387
    %v478 = vunpack.c.h.b16 %v387
    %v479 = vunpack.c.l.b16 %v388
    %v480 = vunpack.c.h.b16 %v388
    %v481 = vunpack.c.l.b16 %v389
    %v482 = vunpack.c.h.b16 %v389
    %v483 = vunpack.c.l.b16 %v390
    %v484 = vunpack.c.h.b16 %v390
    %v485 = vunpack.c.l.b16 %v391
    %v486 = vunpack.c.h.b16 %v391
    %v487 = vunpack.c.l.b16 %v392
    %v488 = vunpack.c.h.b16 %v392
    %v489 = vpack.c.b16 %v429, %v425
    %v490 = vpack.c.b16 %v430, %v426
    %v491 = vpack.c.b16 %v431, %v427
    %v492 = vpack.c.b16 %v432, %v428
    %v493 = vpack.c.b16 %v437, %v433
    %v494 = vpack.c.b16 %v438, %v434
    %v495 = vpack.c.b16 %v439, %v435
    %v496 = vpack.c.b16 %v440, %v436
    %v497 = vpack.c.b16 %v445, %v441
    %v498 = vpack.c.b16 %v446, %v442
    %v499 = vpack.c.b16 %v447, %v443
    %v500 = vpack.c.b16 %v448, %v444
    %v501 = vpack.c.b16 %v453, %v449
    %v502 = vpack.c.b16 %v454, %v450
    %v503 = vpack.c.b16 %v455, %v451
    %v504 = vpack.c.b16 %v456, %v452
    %v505 = vpack.c.b16 %v461, %v457
    %v506 = vpack.c.b16 %v462, %v458
    %v507 = vpack.c.b16 %v463, %v459
    %v508 = vpack.c.b16 %v464, %v460
    %v509 = vpack.c.b16 %v469, %v465
    %v510 = vpack.c.b16 %v470, %v466
    %v511 = vpack.c.b16 %v471, %v467
    %v512 = vpack.c.b16 %v472, %v468
    %v513 = vpack.c.b16 %v477, %v473
    %v514 = vpack.c.b16 %v478, %v474
    %v515 = vpack.c.b16 %v479, %v475
    %v516 = vpack.c.b16 %v480, %v476
    %v517 = vpack.c.b16 %v485, %v481
    %v518 = vpack.c.b16 %v486, %v482
    %v519 = vpack.c.b16 %v487, %v483
    %v520 = vpack.c.b16 %v488, %v484
    %553 = vmatprep.subr.bf16.mxu0 %v490
    %554 = vmatpush1.bf16.msra.mxu0 %v489
    %555 = vmatprep.subr.bf16.mxu0 %v494
    %556 = vmatpush1.bf16.msra.mxu0 %v493
    %557 = vmatprep.subr.bf16.mxu0 %v498
    %558 = vmatpush1.bf16.msra.mxu0 %v497
    %559 = vmatprep.subr.bf16.mxu0 %v502
    %560 = vmatpush1.bf16.msra.mxu0 %v501
    %561 = vmatprep.subr.bf16.mxu0 %v506
    %562 = vmatpush1.bf16.msra.mxu0 %v505
    %563 = vmatprep.subr.bf16.mxu0 %v510
    %564 = vmatpush1.bf16.msra.mxu0 %v509
    %565 = vmatprep.subr.bf16.mxu0 %v514
    %566 = vmatpush1.bf16.msra.mxu0 %v513
    %567 = vmatprep.subr.bf16.mxu0 %v518
    %568 = vmatpush1.bf16.msra.mxu0 %v517
    %569 = vmatprep.subr.bf16.mxu0 0
    %570 = vmatpush1.bf16.msra.mxu0 0
    %571 = vmatprep.subr.bf16.mxu0 0
    %572 = vmatpush1.bf16.msra.mxu0 0
    %573 = vmatprep.subr.bf16.mxu0 0
    %574 = vmatpush1.bf16.msra.mxu0 0
    %575 = vmatprep.subr.bf16.mxu0 0
    %576 = vmatpush1.bf16.msra.mxu0 0
    %577 = vmatprep.subr.bf16.mxu0 0
    %578 = vmatpush1.bf16.msra.mxu0 0
    %579 = vmatprep.subr.bf16.mxu0 0
    %580 = vmatpush1.bf16.msra.mxu0 0
    %581 = vmatprep.subr.bf16.mxu0 0
    %582 = vmatpush1.bf16.msra.mxu0 0
    %583 = vmatprep.subr.bf16.mxu0 0
    %584 = vmatpush1.bf16.msra.mxu0 0
    %585 = vmatprep.mubr.bf16.mxu0 0
    %586 = vmatmul.mubr.bf16.gmra.mrb[0].mxu0 %v360
    %v587 = vpop.f32.mrb[0].mxu0
    %v588 = vadd.f32 0.0, %v587
    %v589 = vpop.f32.mrb[0].mxu0
    %v590 = vadd.f32 0.0, %v589
    %v591 = vpop.f32.mrb[0].mxu0
    %v592 = vpop.f32.mrb[0].mxu0
    %593 = vdwg.mxu0
    %594 = vmatprep.subr.bf16.mxu0 %v492
    %595 = vmatpush1.bf16.msra.mxu0 %v491
    %596 = vmatprep.subr.bf16.mxu0 %v496
    %597 = vmatpush1.bf16.msra.mxu0 %v495
    %598 = vmatprep.subr.bf16.mxu0 %v500
    %599 = vmatpush1.bf16.msra.mxu0 %v499
    %600 = vmatprep.subr.bf16.mxu0 %v504
    %601 = vmatpush1.bf16.msra.mxu0 %v503
    %602 = vmatprep.subr.bf16.mxu0 %v508
    %603 = vmatpush1.bf16.msra.mxu0 %v507
    %604 = vmatprep.subr.bf16.mxu0 %v512
    %605 = vmatpush1.bf16.msra.mxu0 %v511
    %606 = vmatprep.subr.bf16.mxu0 %v516
    %607 = vmatpush1.bf16.msra.mxu0 %v515
    %608 = vmatprep.subr.bf16.mxu0 %v520
    %609 = vmatpush1.bf16.msra.mxu0 %v519
    %610 = vmatprep.subr.bf16.mxu0 0
    %611 = vmatpush1.bf16.msra.mxu0 0
    %612 = vmatprep.subr.bf16.mxu0 0
    %613 = vmatpush1.bf16.msra.mxu0 0
    %614 = vmatprep.subr.bf16.mxu0 0
    %615 = vmatpush1.bf16.msra.mxu0 0
    %616 = vmatprep.subr.bf16.mxu0 0
    %617 = vmatpush1.bf16.msra.mxu0 0
    %618 = vmatprep.subr.bf16.mxu0 0
    %619 = vmatpush1.bf16.msra.mxu0 0
    %620 = vmatprep.subr.bf16.mxu0 0
    %621 = vmatpush1.bf16.msra.mxu0 0
    %622 = vmatprep.subr.bf16.mxu0 0
    %623 = vmatpush1.bf16.msra.mxu0 0
    %624 = vmatprep.subr.bf16.mxu0 0
    %625 = vmatpush1.bf16.msra.mxu0 0
    %626 = vmatprep.mubr.bf16.mxu0 0
    %627 = vmatmul.mubr.bf16.gmra.mrb[0].mxu0 %v360
    %v628 = vpop.f32.mrb[0].mxu0
    %v629 = vadd.f32 0.0, %v628
    %v630 = vpop.f32.mrb[0].mxu0
    %v631 = vadd.f32 0.0, %v630
    %v632 = vpop.f32.mrb[0].mxu0
    %v633 = vpop.f32.mrb[0].mxu0
    %634 = vdwg.mxu0
    %v635 = vadd.f32 %v356, %v588
    %v636 = vadd.f32 %v357, %v590
    %v637 = vadd.f32 %v358, %v629
    %v638 = vadd.f32 %v359, %v631
    %v639 = vxor.u32 %v635, 2147483648
    %v640 = vmul.f32 %v639, 1.442695
    %v641 = vpow.pop %v640
    %v642 = vadd.f32 %v641, 1.0
    %v643 = vrcp.pop %v642
    %v644 = vmul.f32 1.0, %v643
    %v645 = vxor.u32 %v636, 2147483648
    %v646 = vmul.f32 %v645, 1.442695
    %v647 = vpow.pop %v646
    %v648 = vadd.f32 %v647, 1.0
    %v649 = vrcp.pop %v648
    %v650 = vmul.f32 1.0, %v649
    %v651 = vtanh.pop %v637
    %v652 = vxor.u32 %v638, 2147483648
    %v653 = vmul.f32 %v652, 1.442695
    %v654 = vpow.pop %v653
    %v655 = vadd.f32 %v654, 1.0
    %v656 = vrcp.pop %v655
    %v657 = vmul.f32 1.0, %v656
    %v658 = vmul.f32 %v650, %v355
    %v659 = vmul.f32 %v644, %v651
    %v660 = vadd.f32 %v658, %v659
    %v661 = vtanh.pop %v660
    %v662 = vmul.f32 %v657, %v661
    %s663 = scalar_lea.vmem [#allocation4], 32
    %v664 = vld [vmem:[%s663] sm:$0xff]
    %v665 = vld [vmem:[%s663 + $0x8] sm:$0xff]
    %v666 = vld [vmem:[%s663 + $0x10] sm:$0xff]
    %v667 = vld [vmem:[%s663 + $0x18] sm:$0xff]
    %v668 = vpack.c.bf16 %v662, %v662
    %669 = vmatprep.subr.bf16.mxu0 %v490
    %670 = vmatpush1.bf16.msra.mxu0 %v489
    %671 = vmatprep.subr.bf16.mxu0 %v494
    %672 = vmatpush1.bf16.msra.mxu0 %v493
    %673 = vmatprep.subr.bf16.mxu0 %v498
    %674 = vmatpush1.bf16.msra.mxu0 %v497
    %675 = vmatprep.subr.bf16.mxu0 %v502
    %676 = vmatpush1.bf16.msra.mxu0 %v501
    %677 = vmatprep.subr.bf16.mxu0 %v506
    %678 = vmatpush1.bf16.msra.mxu0 %v505
    %679 = vmatprep.subr.bf16.mxu0 %v510
    %680 = vmatpush1.bf16.msra.mxu0 %v509
    %681 = vmatprep.subr.bf16.mxu0 %v514
    %682 = vmatpush1.bf16.msra.mxu0 %v513
    %683 = vmatprep.subr.bf16.mxu0 %v518
    %684 = vmatpush1.bf16.msra.mxu0 %v517
    %685 = vmatprep.subr.bf16.mxu0 0
    %686 = vmatpush1.bf16.msra.mxu0 0
    %687 = vmatprep.subr.bf16.mxu0 0
    %688 = vmatpush1.bf16.msra.mxu0 0
    %689 = vmatprep.subr.bf16.mxu0 0
    %690 = vmatpush1.bf16.msra.mxu0 0
    %691 = vmatprep.subr.bf16.mxu0 0
    %692 = vmatpush1.bf16.msra.mxu0 0
    %693 = vmatprep.subr.bf16.mxu0 0
    %694 = vmatpush1.bf16.msra.mxu0 0
    %695 = vmatprep.subr.bf16.mxu0 0
    %696 = vmatpush1.bf16.msra.mxu0 0
    %697 = vmatprep.subr.bf16.mxu0 0
    %698 = vmatpush1.bf16.msra.mxu0 0
    %699 = vmatprep.subr.bf16.mxu0 0
    %700 = vmatpush1.bf16.msra.mxu0 0
    %701 = vmatprep.mubr.bf16.mxu0 0
    %702 = vmatmul.mubr.bf16.gmra.mrb[0].mxu0 %v668
    %v703 = vpop.f32.mrb[0].mxu0
    %v704 = vadd.f32 0.0, %v703
    %v705 = vpop.f32.mrb[0].mxu0
    %v706 = vadd.f32 0.0, %v705
    %v707 = vpop.f32.mrb[0].mxu0
    %v708 = vpop.f32.mrb[0].mxu0
    %709 = vdwg.mxu0
    %710 = vmatprep.subr.bf16.mxu0 %v492
    %711 = vmatpush1.bf16.msra.mxu0 %v491
    %712 = vmatprep.subr.bf16.mxu0 %v496
    %713 = vmatpush1.bf16.msra.mxu0 %v495
    %714 = vmatprep.subr.bf16.mxu0 %v500
    %715 = vmatpush1.bf16.msra.mxu0 %v499
    %716 = vmatprep.subr.bf16.mxu0 %v504
    %717 = vmatpush1.bf16.msra.mxu0 %v503
    %718 = vmatprep.subr.bf16.mxu0 %v508
    %719 = vmatpush1.bf16.msra.mxu0 %v507
    %720 = vmatprep.subr.bf16.mxu0 %v512
    %721 = vmatpush1.bf16.msra.mxu0 %v511
    %722 = vmatprep.subr.bf16.mxu0 %v516
    %723 = vmatpush1.bf16.msra.mxu0 %v515
    %724 = vmatprep.subr.bf16.mxu0 %v520
    %725 = vmatpush1.bf16.msra.mxu0 %v519
    %726 = vmatprep.subr.bf16.mxu0 0
    %727 = vmatpush1.bf16.msra.mxu0 0
    %728 = vmatprep.subr.bf16.mxu0 0
    %729 = vmatpush1.bf16.msra.mxu0 0
    %730 = vmatprep.subr.bf16.mxu0 0
    %731 = vmatpush1.bf16.msra.mxu0 0
    %732 = vmatprep.subr.bf16.mxu0 0
    %733 = vmatpush1.bf16.msra.mxu0 0
    %734 = vmatprep.subr.bf16.mxu0 0
    %735 = vmatpush1.bf16.msra.mxu0 0
    %736 = vmatprep.subr.bf16.mxu0 0
    %737 = vmatpush1.bf16.msra.mxu0 0
    %738 = vmatprep.subr.bf16.mxu0 0
    %739 = vmatpush1.bf16.msra.mxu0 0
    %740 = vmatprep.subr.bf16.mxu0 0
    %741 = vmatpush1.bf16.msra.mxu0 0
    %742 = vmatprep.mubr.bf16.mxu0 0
    %743 = vmatmul.mubr.bf16.gmra.mrb[0].mxu0 %v668
    %v744 = vpop.f32.mrb[0].mxu0
    %v745 = vadd.f32 0.0, %v744
    %v746 = vpop.f32.mrb[0].mxu0
    %v747 = vadd.f32 0.0, %v746
    %v748 = vpop.f32.mrb[0].mxu0
    %v749 = vpop.f32.mrb[0].mxu0
    %750 = vdwg.mxu0
    %v751 = vadd.f32 %v664, %v704
    %v752 = vadd.f32 %v665, %v706
    %v753 = vadd.f32 %v666, %v745
    %v754 = vadd.f32 %v667, %v747
    %v755 = vxor.u32 %v751, 2147483648
    %v756 = vmul.f32 %v755, 1.442695
    %v757 = vpow.pop %v756
    %v758 = vadd.f32 %v757, 1.0
    %v759 = vrcp.pop %v758
    %v760 = vmul.f32 1.0, %v759
    %v761 = vxor.u32 %v752, 2147483648
    %v762 = vmul.f32 %v761, 1.442695
    %v763 = vpow.pop %v762
    %v764 = vadd.f32 %v763, 1.0
    %v765 = vrcp.pop %v764
    %v766 = vmul.f32 1.0, %v765
    %v767 = vtanh.pop %v753
    %v768 = vxor.u32 %v754, 2147483648
    %v769 = vmul.f32 %v768, 1.442695
    %v770 = vpow.pop %v769
    %v771 = vadd.f32 %v770, 1.0
    %v772 = vrcp.pop %v771
    %v773 = vmul.f32 1.0, %v772
    %v774 = vmul.f32 %v766, %v660
    %v775 = vmul.f32 %v760, %v767
    %v776 = vadd.f32 %v774, %v775
    %v777 = vtanh.pop %v776
    %v778 = vmul.f32 %v773, %v777
    %s779 = scalar_lea.vmem [#allocation4], 64
    %v780 = vld [vmem:[%s779] sm:$0xff]
    %v781 = vld [vmem:[%s779 + $0x8] sm:$0xff]
    %v782 = vld [vmem:[%s779 + $0x10] sm:$0xff]
    %v783 = vld [vmem:[%s779 + $0x18] sm:$0xff]
    %v784 = vpack.c.bf16 %v778, %v778
    %785 = vmatprep.subr.bf16.mxu0 %v490
    %786 = vmatpush1.bf16.msra.mxu0 %v489
    %787 = vmatprep.subr.bf16.mxu0 %v494
    %788 = vmatpush1.bf16.msra.mxu0 %v493
    %789 = vmatprep.subr.bf16.mxu0 %v498
    %790 = vmatpush1.bf16.msra.mxu0 %v497
    %791 = vmatprep.subr.bf16.mxu0 %v502
    %792 = vmatpush1.bf16.msra.mxu0 %v501
    %793 = vmatprep.subr.bf16.mxu0 %v506
    %794 = vmatpush1.bf16.msra.mxu0 %v505
    %795 = vmatprep.subr.bf16.mxu0 %v510
    %796 = vmatpush1.bf16.msra.mxu0 %v509
    %797 = vmatprep.subr.bf16.mxu0 %v514
    %798 = vmatpush1.bf16.msra.mxu0 %v513
    %799 = vmatprep.subr.bf16.mxu0 %v518
    %800 = vmatpush1.bf16.msra.mxu0 %v517
    %801 = vmatprep.subr.bf16.mxu0 0
    %802 = vmatpush1.bf16.msra.mxu0 0
    %803 = vmatprep.subr.bf16.mxu0 0
    %804 = vmatpush1.bf16.msra.mxu0 0
    %805 = vmatprep.subr.bf16.mxu0 0
    %806 = vmatpush1.bf16.msra.mxu0 0
    %807 = vmatprep.subr.bf16.mxu0 0
    %808 = vmatpush1.bf16.msra.mxu0 0
    %809 = vmatprep.subr.bf16.mxu0 0
    %810 = vmatpush1.bf16.msra.mxu0 0
    %811 = vmatprep.subr.bf16.mxu0 0
    %812 = vmatpush1.bf16.msra.mxu0 0
    %813 = vmatprep.subr.bf16.mxu0 0
    %814 = vmatpush1.bf16.msra.mxu0 0
    %815 = vmatprep.subr.bf16.mxu0 0
    %816 = vmatpush1.bf16.msra.mxu0 0
    %817 = vmatprep.mubr.bf16.mxu0 0
    %818 = vmatmul.mubr.bf16.gmra.mrb[0].mxu0 %v784
    %v819 = vpop.f32.mrb[0].mxu0
    %v820 = vadd.f32 0.0, %v819
    %v821 = vpop.f32.mrb[0].mxu0
    %v822 = vadd.f32 0.0, %v821
    %v823 = vpop.f32.mrb[0].mxu0
    %v824 = vpop.f32.mrb[0].mxu0
    %825 = vdwg.mxu0
    %826 = vmatprep.subr.bf16.mxu0 %v492
    %827 = vmatpush1.bf16.msra.mxu0 %v491
    %828 = vmatprep.subr.bf16.mxu0 %v496
    %829 = vmatpush1.bf16.msra.mxu0 %v495
    %830 = vmatprep.subr.bf16.mxu0 %v500
    %831 = vmatpush1.bf16.msra.mxu0 %v499
    %832 = vmatprep.subr.bf16.mxu0 %v504
    %833 = vmatpush1.bf16.msra.mxu0 %v503
    %834 = vmatprep.subr.bf16.mxu0 %v508
    %835 = vmatpush1.bf16.msra.mxu0 %v507
    %836 = vmatprep.subr.bf16.mxu0 %v512
    %837 = vmatpush1.bf16.msra.mxu0 %v511
    %838 = vmatprep.subr.bf16.mxu0 %v516
    %839 = vmatpush1.bf16.msra.mxu0 %v515
    %840 = vmatprep.subr.bf16.mxu0 %v520
    %841 = vmatpush1.bf16.msra.mxu0 %v519
    %842 = vmatprep.subr.bf16.mxu0 0
    %843 = vmatpush1.bf16.msra.mxu0 0
    %844 = vmatprep.subr.bf16.mxu0 0
    %845 = vmatpush1.bf16.msra.mxu0 0
    %846 = vmatprep.subr.bf16.mxu0 0
    %847 = vmatpush1.bf16.msra.mxu0 0
    %848 = vmatprep.subr.bf16.mxu0 0
    %849 = vmatpush1.bf16.msra.mxu0 0
    %850 = vmatprep.subr.bf16.mxu0 0
    %851 = vmatpush1.bf16.msra.mxu0 0
    %852 = vmatprep.subr.bf16.mxu0 0
    %853 = vmatpush1.bf16.msra.mxu0 0
    %854 = vmatprep.subr.bf16.mxu0 0
    %855 = vmatpush1.bf16.msra.mxu0 0
    %856 = vmatprep.subr.bf16.mxu0 0
    %857 = vmatpush1.bf16.msra.mxu0 0
    %858 = vmatprep.mubr.bf16.mxu0 0
    %859 = vmatmul.mubr.bf16.gmra.mrb[0].mxu0 %v784
    %v860 = vpop.f32.mrb[0].mxu0
    %v861 = vadd.f32 0.0, %v860
    %v862 = vpop.f32.mrb[0].mxu0
    %v863 = vadd.f32 0.0, %v862
    %v864 = vpop.f32.mrb[0].mxu0
    %v865 = vpop.f32.mrb[0].mxu0
    %866 = vdwg.mxu0
    %v867 = vadd.f32 %v780, %v820
    %v868 = vadd.f32 %v781, %v822
    %v869 = vadd.f32 %v782, %v861
    %v870 = vadd.f32 %v783, %v863
    %v871 = vxor.u32 %v867, 2147483648
    %v872 = vmul.f32 %v871, 1.442695
    %v873 = vpow.pop %v872
    %v874 = vadd.f32 %v873, 1.0
    %v875 = vrcp.pop %v874
    %v876 = vmul.f32 1.0, %v875
    %v877 = vxor.u32 %v868, 2147483648
    %v878 = vmul.f32 %v877, 1.442695
    %v879 = vpow.pop %v878
    %v880 = vadd.f32 %v879, 1.0
    %v881 = vrcp.pop %v880
    %v882 = vmul.f32 1.0, %v881
    %v883 = vtanh.pop %v869
    %v884 = vxor.u32 %v870, 2147483648
    %v885 = vmul.f32 %v884, 1.442695
    %v886 = vpow.pop %v885
    %v887 = vadd.f32 %v886, 1.0
    %v888 = vrcp.pop %v887
    %v889 = vmul.f32 1.0, %v888
    %v890 = vmul.f32 %v882, %v776
    %v891 = vmul.f32 %v876, %v883
    %v892 = vadd.f32 %v890, %v891
    %v893 = vtanh.pop %v892
    %v894 = vmul.f32 %v889, %v893
    %s895 = scalar_lea.vmem [#allocation4], 96
    %v896 = vld [vmem:[%s895] sm:$0xff]
    %v897 = vld [vmem:[%s895 + $0x8] sm:$0xff]
    %v898 = vld [vmem:[%s895 + $0x10] sm:$0xff]
    %v899 = vld [vmem:[%s895 + $0x18] sm:$0xff]
    %v900 = vpack.c.bf16 %v894, %v894
    %901 = vmatprep.subr.bf16.mxu0 %v490
    %902 = vmatpush1.bf16.msra.mxu0 %v489
    %903 = vmatprep.subr.bf16.mxu0 %v494
    %904 = vmatpush1.bf16.msra.mxu0 %v493
    %905 = vmatprep.subr.bf16.mxu0 %v498
    %906 = vmatpush1.bf16.msra.mxu0 %v497
    %907 = vmatprep.subr.bf16.mxu0 %v502
    %908 = vmatpush1.bf16.msra.mxu0 %v501
    %909 = vmatprep.subr.bf16.mxu0 %v506
    %910 = vmatpush1.bf16.msra.mxu0 %v505
    %911 = vmatprep.subr.bf16.mxu0 %v510
    %912 = vmatpush1.bf16.msra.mxu0 %v509
    %913 = vmatprep.subr.bf16.mxu0 %v514
    %914 = vmatpush1.bf16.msra.mxu0 %v513
    %915 = vmatprep.subr.bf16.mxu0 %v518
    %916 = vmatpush1.bf16.msra.mxu0 %v517
    %917 = vmatprep.subr.bf16.mxu0 0
    %918 = vmatpush1.bf16.msra.mxu0 0
    %919 = vmatprep.subr.bf16.mxu0 0
    %920 = vmatpush1.bf16.msra.mxu0 0
    %921 = vmatprep.subr.bf16.mxu0 0
    %922 = vmatpush1.bf16.msra.mxu0 0
    %923 = vmatprep.subr.bf16.mxu0 0
    %924 = vmatpush1.bf16.msra.mxu0 0
    %925 = vmatprep.subr.bf16.mxu0 0
    %926 = vmatpush1.bf16.msra.mxu0 0
    %927 = vmatprep.subr.bf16.mxu0 0
    %928 = vmatpush1.bf16.msra.mxu0 0
    %929 = vmatprep.subr.bf16.mxu0 0
    %930 = vmatpush1.bf16.msra.mxu0 0
    %931 = vmatprep.subr.bf16.mxu0 0
    %932 = vmatpush1.bf16.msra.mxu0 0
    %933 = vmatprep.mubr.bf16.mxu0 0
    %934 = vmatmul.mubr.bf16.gmra.mrb[0].mxu0 %v900
    %v935 = vpop.f32.mrb[0].mxu0
    %v936 = vadd.f32 0.0, %v935
    %v937 = vpop.f32.mrb[0].mxu0
    %v938 = vadd.f32 0.0, %v937
    %v939 = vpop.f32.mrb[0].mxu0
    %v940 = vpop.f32.mrb[0].mxu0
    %941 = vdwg.mxu0
    %942 = vmatprep.subr.bf16.mxu0 %v492
    %943 = vmatpush1.bf16.msra.mxu0 %v491
    %944 = vmatprep.subr.bf16.mxu0 %v496
    %945 = vmatpush1.bf16.msra.mxu0 %v495
    %946 = vmatprep.subr.bf16.mxu0 %v500
    %947 = vmatpush1.bf16.msra.mxu0 %v499
    %948 = vmatprep.subr.bf16.mxu0 %v504
    %949 = vmatpush1.bf16.msra.mxu0 %v503
    %950 = vmatprep.subr.bf16.mxu0 %v508
    %951 = vmatpush1.bf16.msra.mxu0 %v507
    %952 = vmatprep.subr.bf16.mxu0 %v512
    %953 = vmatpush1.bf16.msra.mxu0 %v511
    %954 = vmatprep.subr.bf16.mxu0 %v516
    %955 = vmatpush1.bf16.msra.mxu0 %v515
    %956 = vmatprep.subr.bf16.mxu0 %v520
    %957 = vmatpush1.bf16.msra.mxu0 %v519
    %958 = vmatprep.subr.bf16.mxu0 0
    %959 = vmatpush1.bf16.msra.mxu0 0
    %960 = vmatprep.subr.bf16.mxu0 0
    %961 = vmatpush1.bf16.msra.mxu0 0
    %962 = vmatprep.subr.bf16.mxu0 0
    %963 = vmatpush1.bf16.msra.mxu0 0
    %964 = vmatprep.subr.bf16.mxu0 0
    %965 = vmatpush1.bf16.msra.mxu0 0
    %966 = vmatprep.subr.bf16.mxu0 0
    %967 = vmatpush1.bf16.msra.mxu0 0
    %968 = vmatprep.subr.bf16.mxu0 0
    %969 = vmatpush1.bf16.msra.mxu0 0
    %970 = vmatprep.subr.bf16.mxu0 0
    %971 = vmatpush1.bf16.msra.mxu0 0
    %972 = vmatprep.subr.bf16.mxu0 0
    %973 = vmatpush1.bf16.msra.mxu0 0
    %974 = vmatprep.mubr.bf16.mxu0 0
    %975 = vmatmul.mubr.bf16.gmra.mrb[0].mxu0 %v900
    %v976 = vpop.f32.mrb[0].mxu0
    %v977 = vadd.f32 0.0, %v976
    %v978 = vpop.f32.mrb[0].mxu0
    %v979 = vadd.f32 0.0, %v978
    %v980 = vpop.f32.mrb[0].mxu0
    %v981 = vpop.f32.mrb[0].mxu0
    %982 = vdwg.mxu0
    %v983 = vadd.f32 %v896, %v936
    %v984 = vadd.f32 %v897, %v938
    %v985 = vadd.f32 %v898, %v977
    %v986 = vadd.f32 %v899, %v979
    %v987 = vxor.u32 %v983, 2147483648
    %v988 = vmul.f32 %v987, 1.442695
    %v989 = vpow.pop %v988
    %v990 = vadd.f32 %v989, 1.0
    %v991 = vrcp.pop %v990
    %v992 = vmul.f32 1.0, %v991
    %v993 = vxor.u32 %v984, 2147483648
    %v994 = vmul.f32 %v993, 1.442695
    %v995 = vpow.pop %v994
    %v996 = vadd.f32 %v995, 1.0
    %v997 = vrcp.pop %v996
    %v998 = vmul.f32 1.0, %v997
    %v999 = vtanh.pop %v985
    %v1000 = vxor.u32 %v986, 2147483648
    %v1001 = vmul.f32 %v1000, 1.442695
    %v1002 = vpow.pop %v1001
    %v1003 = vadd.f32 %v1002, 1.0
    %v1004 = vrcp.pop %v1003
    %v1005 = vmul.f32 1.0, %v1004
    %v1006 = vmul.f32 %v998, %v892
    %v1007 = vmul.f32 %v992, %v999
    %v1008 = vadd.f32 %v1006, %v1007
    %v1009 = vtanh.pop %v1008
    %v1010 = vmul.f32 %v1005, %v1009
    %s1011 = scalar_lea.vmem [#allocation4], 128
    %v1012 = vld [vmem:[%s1011] sm:$0xff]
    %v1013 = vld [vmem:[%s1011 + $0x8] sm:$0xff]
    %v1014 = vld [vmem:[%s1011 + $0x10] sm:$0xff]
    %v1015 = vld [vmem:[%s1011 + $0x18] sm:$0xff]
    %v1016 = vpack.c.bf16 %v1010, %v1010
    %1017 = vmatprep.subr.bf16.mxu0 %v490
    %1018 = vmatpush1.bf16.msra.mxu0 %v489
    %1019 = vmatprep.subr.bf16.mxu0 %v494
    %1020 = vmatpush1.bf16.msra.mxu0 %v493
    %1021 = vmatprep.subr.bf16.mxu0 %v498
    %1022 = vmatpush1.bf16.msra.mxu0 %v497
    %1023 = vmatprep.subr.bf16.mxu0 %v502
    %1024 = vmatpush1.bf16.msra.mxu0 %v501
    %1025 = vmatprep.subr.bf16.mxu0 %v506
    %1026 = vmatpush1.bf16.msra.mxu0 %v505
    %1027 = vmatprep.subr.bf16.mxu0 %v510
    %1028 = vmatpush1.bf16.msra.mxu0 %v509
    %1029 = vmatprep.subr.bf16.mxu0 %v514
    %1030 = vmatpush1.bf16.msra.mxu0 %v513
    %1031 = vmatprep.subr.bf16.mxu0 %v518
    %1032 = vmatpush1.bf16.msra.mxu0 %v517
    %1033 = vmatprep.subr.bf16.mxu0 0
    %1034 = vmatpush1.bf16.msra.mxu0 0
    %1035 = vmatprep.subr.bf16.mxu0 0
    %1036 = vmatpush1.bf16.msra.mxu0 0
    %1037 = vmatprep.subr.bf16.mxu0 0
    %1038 = vmatpush1.bf16.msra.mxu0 0
    %1039 = vmatprep.subr.bf16.mxu0 0
    %1040 = vmatpush1.bf16.msra.mxu0 0
    %1041 = vmatprep.subr.bf16.mxu0 0
    %1042 = vmatpush1.bf16.msra.mxu0 0
    %1043 = vmatprep.subr.bf16.mxu0 0
    %1044 = vmatpush1.bf16.msra.mxu0 0
    %1045 = vmatprep.subr.bf16.mxu0 0
    %1046 = vmatpush1.bf16.msra.mxu0 0
    %1047 = vmatprep.subr.bf16.mxu0 0
    %1048 = vmatpush1.bf16.msra.mxu0 0
    %1049 = vmatprep.mubr.bf16.mxu0 0
    %1050 = vmatmul.mubr.bf16.gmra.mrb[0].mxu0 %v1016
    %v1051 = vpop.f32.mrb[0].mxu0
    %v1052 = vadd.f32 0.0, %v1051
    %v1053 = vpop.f32.mrb[0].mxu0
    %v1054 = vadd.f32 0.0, %v1053
    %v1055 = vpop.f32.mrb[0].mxu0
    %v1056 = vpop.f32.mrb[0].mxu0
    %1057 = vdwg.mxu0
    %1058 = vmatprep.subr.bf16.mxu0 %v492
    %1059 = vmatpush1.bf16.msra.mxu0 %v491
    %1060 = vmatprep.subr.bf16.mxu0 %v496
    %1061 = vmatpush1.bf16.msra.mxu0 %v495
    %1062 = vmatprep.subr.bf16.mxu0 %v500
    %1063 = vmatpush1.bf16.msra.mxu0 %v499
    %1064 = vmatprep.subr.bf16.mxu0 %v504
    %1065 = vmatpush1.bf16.msra.mxu0 %v503
    %1066 = vmatprep.subr.bf16.mxu0 %v508
    %1067 = vmatpush1.bf16.msra.mxu0 %v507
    %1068 = vmatprep.subr.bf16.mxu0 %v512
    %1069 = vmatpush1.bf16.msra.mxu0 %v511
    %1070 = vmatprep.subr.bf16.mxu0 %v516
    %1071 = vmatpush1.bf16.msra.mxu0 %v515
    %1072 = vmatprep.subr.bf16.mxu0 %v520
    %1073 = vmatpush1.bf16.msra.mxu0 %v519
    %1074 = vmatprep.subr.bf16.mxu0 0
    %1075 = vmatpush1.bf16.msra.mxu0 0
    %1076 = vmatprep.subr.bf16.mxu0 0
    %1077 = vmatpush1.bf16.msra.mxu0 0
    %1078 = vmatprep.subr.bf16.mxu0 0
    %1079 = vmatpush1.bf16.msra.mxu0 0
    %1080 = vmatprep.subr.bf16.mxu0 0
    %1081 = vmatpush1.bf16.msra.mxu0 0
    %1082 = vmatprep.subr.bf16.mxu0 0
    %1083 = vmatpush1.bf16.msra.mxu0 0
    %1084 = vmatprep.subr.bf16.mxu0 0
    %1085 = vmatpush1.bf16.msra.mxu0 0
    %1086 = vmatprep.subr.bf16.mxu0 0
    %1087 = vmatpush1.bf16.msra.mxu0 0
    %1088 = vmatprep.subr.bf16.mxu0 0
    %1089 = vmatpush1.bf16.msra.mxu0 0
    %1090 = vmatprep.mubr.bf16.mxu0 0
    %1091 = vmatmul.mubr.bf16.gmra.mrb[0].mxu0 %v1016
    %v1092 = vpop.f32.mrb[0].mxu0
    %v1093 = vadd.f32 0.0, %v1092
    %v1094 = vpop.f32.mrb[0].mxu0
    %v1095 = vadd.f32 0.0, %v1094
    %v1096 = vpop.f32.mrb[0].mxu0
    %v1097 = vpop.f32.mrb[0].mxu0
    %1098 = vdwg.mxu0
    %v1099 = vadd.f32 %v1012, %v1052
    %v1100 = vadd.f32 %v1013, %v1054
    %v1101 = vadd.f32 %v1014, %v1093
    %v1102 = vadd.f32 %v1015, %v1095
    %v1103 = vxor.u32 %v1099, 2147483648
    %v1104 = vmul.f32 %v1103, 1.442695
    %v1105 = vpow.pop %v1104
    %v1106 = vadd.f32 %v1105, 1.0
    %v1107 = vrcp.pop %v1106
    %v1108 = vmul.f32 1.0, %v1107
    %v1109 = vxor.u32 %v1100, 2147483648
    %v1110 = vmul.f32 %v1109, 1.442695
    %v1111 = vpow.pop %v1110
    %v1112 = vadd.f32 %v1111, 1.0
    %v1113 = vrcp.pop %v1112
    %v1114 = vmul.f32 1.0, %v1113
    %v1115 = vtanh.pop %v1101
    %v1116 = vxor.u32 %v1102, 2147483648
    %v1117 = vmul.f32 %v1116, 1.442695
    %v1118 = vpow.pop %v1117
    %v1119 = vadd.f32 %v1118, 1.0
    %v1120 = vrcp.pop %v1119
    %v1121 = vmul.f32 1.0, %v1120
    %v1122 = vmul.f32 %v1114, %v1008
    %v1123 = vmul.f32 %v1108, %v1115
    %v1124 = vadd.f32 %v1122, %v1123
    %v1125 = vtanh.pop %v1124
    %v1126 = vmul.f32 %v1121, %v1125
    %s1127 = scalar_lea.vmem [#allocation4], 160
    %v1128 = vld [vmem:[%s1127] sm:$0xff]
    %v1129 = vld [vmem:[%s1127 + $0x8] sm:$0xff]
    %v1130 = vld [vmem:[%s1127 + $0x10] sm:$0xff]
    %v1131 = vld [vmem:[%s1127 + $0x18] sm:$0xff]
    %v1132 = vpack.c.bf16 %v1126, %v1126
    %1133 = vmatprep.subr.bf16.mxu0 %v490
    %1134 = vmatpush1.bf16.msra.mxu0 %v489
    %1135 = vmatprep.subr.bf16.mxu0 %v494
    %1136 = vmatpush1.bf16.msra.mxu0 %v493
    %1137 = vmatprep.subr.bf16.mxu0 %v498
    %1138 = vmatpush1.bf16.msra.mxu0 %v497
    %1139 = vmatprep.subr.bf16.mxu0 %v502
    %1140 = vmatpush1.bf16.msra.mxu0 %v501
    %1141 = vmatprep.subr.bf16.mxu0 %v506
    %1142 = vmatpush1.bf16.msra.mxu0 %v505
    %1143 = vmatprep.subr.bf16.mxu0 %v510
    %1144 = vmatpush1.bf16.msra.mxu0 %v509
    %1145 = vmatprep.subr.bf16.mxu0 %v514
    %1146 = vmatpush1.bf16.msra.mxu0 %v513
    %1147 = vmatprep.subr.bf16.mxu0 %v518
    %1148 = vmatpush1.bf16.msra.mxu0 %v517
    %1149 = vmatprep.subr.bf16.mxu0 0
    %1150 = vmatpush1.bf16.msra.mxu0 0
    %1151 = vmatprep.subr.bf16.mxu0 0
    %1152 = vmatpush1.bf16.msra.mxu0 0
    %1153 = vmatprep.subr.bf16.mxu0 0
    %1154 = vmatpush1.bf16.msra.mxu0 0
    %1155 = vmatprep.subr.bf16.mxu0 0
    %1156 = vmatpush1.bf16.msra.mxu0 0
    %1157 = vmatprep.subr.bf16.mxu0 0
    %1158 = vmatpush1.bf16.msra.mxu0 0
    %1159 = vmatprep.subr.bf16.mxu0 0
    %1160 = vmatpush1.bf16.msra.mxu0 0
    %1161 = vmatprep.subr.bf16.mxu0 0
    %1162 = vmatpush1.bf16.msra.mxu0 0
    %1163 = vmatprep.subr.bf16.mxu0 0
    %1164 = vmatpush1.bf16.msra.mxu0 0
    %1165 = vmatprep.mubr.bf16.mxu0 0
    %1166 = vmatmul.mubr.bf16.gmra.mrb[0].mxu0 %v1132
    %v1167 = vpop.f32.mrb[0].mxu0
    %v1168 = vadd.f32 0.0, %v1167
    %v1169 = vpop.f32.mrb[0].mxu0
    %v1170 = vadd.f32 0.0, %v1169
    %v1171 = vpop.f32.mrb[0].mxu0
    %v1172 = vpop.f32.mrb[0].mxu0
    %1173 = vdwg.mxu0
    %1174 = vmatprep.subr.bf16.mxu0 %v492
    %1175 = vmatpush1.bf16.msra.mxu0 %v491
    %1176 = vmatprep.subr.bf16.mxu0 %v496
    %1177 = vmatpush1.bf16.msra.mxu0 %v495
    %1178 = vmatprep.subr.bf16.mxu0 %v500
    %1179 = vmatpush1.bf16.msra.mxu0 %v499
    %1180 = vmatprep.subr.bf16.mxu0 %v504
    %1181 = vmatpush1.bf16.msra.mxu0 %v503
    %1182 = vmatprep.subr.bf16.mxu0 %v508
    %1183 = vmatpush1.bf16.msra.mxu0 %v507
    %1184 = vmatprep.subr.bf16.mxu0 %v512
    %1185 = vmatpush1.bf16.msra.mxu0 %v511
    %1186 = vmatprep.subr.bf16.mxu0 %v516
    %1187 = vmatpush1.bf16.msra.mxu0 %v515
    %1188 = vmatprep.subr.bf16.mxu0 %v520
    %1189 = vmatpush1.bf16.msra.mxu0 %v519
    %1190 = vmatprep.subr.bf16.mxu0 0
    %1191 = vmatpush1.bf16.msra.mxu0 0
    %1192 = vmatprep.subr.bf16.mxu0 0
    %1193 = vmatpush1.bf16.msra.mxu0 0
    %1194 = vmatprep.subr.bf16.mxu0 0
    %1195 = vmatpush1.bf16.msra.mxu0 0
    %1196 = vmatprep.subr.bf16.mxu0 0
    %1197 = vmatpush1.bf16.msra.mxu0 0
    %1198 = vmatprep.subr.bf16.mxu0 0
    %1199 = vmatpush1.bf16.msra.mxu0 0
    %1200 = vmatprep.subr.bf16.mxu0 0
    %1201 = vmatpush1.bf16.msra.mxu0 0
    %1202 = vmatprep.subr.bf16.mxu0 0
    %1203 = vmatpush1.bf16.msra.mxu0 0
    %1204 = vmatprep.subr.bf16.mxu0 0
    %1205 = vmatpush1.bf16.msra.mxu0 0
    %1206 = vmatprep.mubr.bf16.mxu0 0
    %1207 = vmatmul.mubr.bf16.gmra.mrb[0].mxu0 %v1132
    %v1208 = vpop.f32.mrb[0].mxu0
    %v1209 = vadd.f32 0.0, %v1208
    %v1210 = vpop.f32.mrb[0].mxu0
    %v1211 = vadd.f32 0.0, %v1210
    %v1212 = vpop.f32.mrb[0].mxu0
    %v1213 = vpop.f32.mrb[0].mxu0
    %1214 = vdwg.mxu0
    %v1215 = vadd.f32 %v1128, %v1168
    %v1216 = vadd.f32 %v1129, %v1170
    %v1217 = vadd.f32 %v1130, %v1209
    %v1218 = vadd.f32 %v1131, %v1211
    %v1219 = vxor.u32 %v1215, 2147483648
    %v1220 = vmul.f32 %v1219, 1.442695
    %v1221 = vpow.pop %v1220
    %v1222 = vadd.f32 %v1221, 1.0
    %v1223 = vrcp.pop %v1222
    %v1224 = vmul.f32 1.0, %v1223
    %v1225 = vxor.u32 %v1216, 2147483648
    %v1226 = vmul.f32 %v1225, 1.442695
    %v1227 = vpow.pop %v1226
    %v1228 = vadd.f32 %v1227, 1.0
    %v1229 = vrcp.pop %v1228
    %v1230 = vmul.f32 1.0, %v1229
    %v1231 = vtanh.pop %v1217
    %v1232 = vxor.u32 %v1218, 2147483648
    %v1233 = vmul.f32 %v1232, 1.442695
    %v1234 = vpow.pop %v1233
    %v1235 = vadd.f32 %v1234, 1.0
    %v1236 = vrcp.pop %v1235
    %v1237 = vmul.f32 1.0, %v1236
    %v1238 = vmul.f32 %v1230, %v1124
    %v1239 = vmul.f32 %v1224, %v1231
    %v1240 = vadd.f32 %v1238, %v1239
    %v1241 = vtanh.pop %v1240
    %v1242 = vmul.f32 %v1237, %v1241
    %s1243 = scalar_lea.vmem [#allocation4], 192
    %v1244 = vld [vmem:[%s1243] sm:$0xff]
    %v1245 = vld [vmem:[%s1243 + $0x8] sm:$0xff]
    %v1246 = vld [vmem:[%s1243 + $0x10] sm:$0xff]
    %v1247 = vld [vmem:[%s1243 + $0x18] sm:$0xff]
    %v1248 = vpack.c.bf16 %v1242, %v1242
    %1249 = vmatprep.subr.bf16.mxu0 %v490
    %1250 = vmatpush1.bf16.msra.mxu0 %v489
    %1251 = vmatprep.subr.bf16.mxu0 %v494
    %1252 = vmatpush1.bf16.msra.mxu0 %v493
    %1253 = vmatprep.subr.bf16.mxu0 %v498
    %1254 = vmatpush1.bf16.msra.mxu0 %v497
    %1255 = vmatprep.subr.bf16.mxu0 %v502
    %1256 = vmatpush1.bf16.msra.mxu0 %v501
    %1257 = vmatprep.subr.bf16.mxu0 %v506
    %1258 = vmatpush1.bf16.msra.mxu0 %v505
    %1259 = vmatprep.subr.bf16.mxu0 %v510
    %1260 = vmatpush1.bf16.msra.mxu0 %v509
    %1261 = vmatprep.subr.bf16.mxu0 %v514
    %1262 = vmatpush1.bf16.msra.mxu0 %v513
    %1263 = vmatprep.subr.bf16.mxu0 %v518
    %1264 = vmatpush1.bf16.msra.mxu0 %v517
    %1265 = vmatprep.subr.bf16.mxu0 0
    %1266 = vmatpush1.bf16.msra.mxu0 0
    %1267 = vmatprep.subr.bf16.mxu0 0
    %1268 = vmatpush1.bf16.msra.mxu0 0
    %1269 = vmatprep.subr.bf16.mxu0 0
    %1270 = vmatpush1.bf16.msra.mxu0 0
    %1271 = vmatprep.subr.bf16.mxu0 0
    %1272 = vmatpush1.bf16.msra.mxu0 0
    %1273 = vmatprep.subr.bf16.mxu0 0
    %1274 = vmatpush1.bf16.msra.mxu0 0
    %1275 = vmatprep.subr.bf16.mxu0 0
    %1276 = vmatpush1.bf16.msra.mxu0 0
    %1277 = vmatprep.subr.bf16.mxu0 0
    %1278 = vmatpush1.bf16.msra.mxu0 0
    %1279 = vmatprep.subr.bf16.mxu0 0
    %1280 = vmatpush1.bf16.msra.mxu0 0
    %1281 = vmatprep.mubr.bf16.mxu0 0
    %1282 = vmatmul.mubr.bf16.gmra.mrb[0].mxu0 %v1248
    %v1283 = vpop.f32.mrb[0].mxu0
    %v1284 = vadd.f32 0.0, %v1283
    %v1285 = vpop.f32.mrb[0].mxu0
    %v1286 = vadd.f32 0.0, %v1285
    %v1287 = vpop.f32.mrb[0].mxu0
    %v1288 = vpop.f32.mrb[0].mxu0
    %1289 = vdwg.mxu0
    %1290 = vmatprep.subr.bf16.mxu0 %v492
    %1291 = vmatpush1.bf16.msra.mxu0 %v491
    %1292 = vmatprep.subr.bf16.mxu0 %v496
    %1293 = vmatpush1.bf16.msra.mxu0 %v495
    %1294 = vmatprep.subr.bf16.mxu0 %v500
    %1295 = vmatpush1.bf16.msra.mxu0 %v499
    %1296 = vmatprep.subr.bf16.mxu0 %v504
    %1297 = vmatpush1.bf16.msra.mxu0 %v503
    %1298 = vmatprep.subr.bf16.mxu0 %v508
    %1299 = vmatpush1.bf16.msra.mxu0 %v507
    %1300 = vmatprep.subr.bf16.mxu0 %v512
    %1301 = vmatpush1.bf16.msra.mxu0 %v511
    %1302 = vmatprep.subr.bf16.mxu0 %v516
    %1303 = vmatpush1.bf16.msra.mxu0 %v515
    %1304 = vmatprep.subr.bf16.mxu0 %v520
    %1305 = vmatpush1.bf16.msra.mxu0 %v519
    %1306 = vmatprep.subr.bf16.mxu0 0
    %1307 = vmatpush1.bf16.msra.mxu0 0
    %1308 = vmatprep.subr.bf16.mxu0 0
    %1309 = vmatpush1.bf16.msra.mxu0 0
    %1310 = vmatprep.subr.bf16.mxu0 0
    %1311 = vmatpush1.bf16.msra.mxu0 0
    %1312 = vmatprep.subr.bf16.mxu0 0
    %1313 = vmatpush1.bf16.msra.mxu0 0
    %1314 = vmatprep.subr.bf16.mxu0 0
    %1315 = vmatpush1.bf16.msra.mxu0 0
    %1316 = vmatprep.subr.bf16.mxu0 0
    %1317 = vmatpush1.bf16.msra.mxu0 0
    %1318 = vmatprep.subr.bf16.mxu0 0
    %1319 = vmatpush1.bf16.msra.mxu0 0
    %1320 = vmatprep.subr.bf16.mxu0 0
    %1321 = vmatpush1.bf16.msra.mxu0 0
    %1322 = vmatprep.mubr.bf16.mxu0 0
    %1323 = vmatmul.mubr.bf16.gmra.mrb[0].mxu0 %v1248
    %v1324 = vpop.f32.mrb[0].mxu0
    %v1325 = vadd.f32 0.0, %v1324
    %v1326 = vpop.f32.mrb[0].mxu0
    %v1327 = vadd.f32 0.0, %v1326
    %v1328 = vpop.f32.mrb[0].mxu0
    %v1329 = vpop.f32.mrb[0].mxu0
    %1330 = vdwg.mxu0
    %v1331 = vadd.f32 %v1244, %v1284
    %v1332 = vadd.f32 %v1245, %v1286
    %v1333 = vadd.f32 %v1246, %v1325
    %v1334 = vadd.f32 %v1247, %v1327
    %v1335 = vxor.u32 %v1331, 2147483648
    %v1336 = vmul.f32 %v1335, 1.442695
    %v1337 = vpow.pop %v1336
    %v1338 = vadd.f32 %v1337, 1.0
    %v1339 = vrcp.pop %v1338
    %v1340 = vmul.f32 1.0, %v1339
    %v1341 = vxor.u32 %v1332, 2147483648
    %v1342 = vmul.f32 %v1341, 1.442695
    %v1343 = vpow.pop %v1342
    %v1344 = vadd.f32 %v1343, 1.0
    %v1345 = vrcp.pop %v1344
    %v1346 = vmul.f32 1.0, %v1345
    %v1347 = vtanh.pop %v1333
    %v1348 = vxor.u32 %v1334, 2147483648
    %v1349 = vmul.f32 %v1348, 1.442695
    %v1350 = vpow.pop %v1349
    %v1351 = vadd.f32 %v1350, 1.0
    %v1352 = vrcp.pop %v1351
    %v1353 = vmul.f32 1.0, %v1352
    %v1354 = vmul.f32 %v1346, %v1240
    %v1355 = vmul.f32 %v1340, %v1347
    %v1356 = vadd.f32 %v1354, %v1355
    %v1357 = vtanh.pop %v1356
    %v1358 = vmul.f32 %v1353, %v1357
    %s1359 = scalar_lea.vmem [#allocation4], 224
    %v1360 = vld [vmem:[%s1359] sm:$0xff]
    %v1361 = vld [vmem:[%s1359 + $0x8] sm:$0xff]
    %v1362 = vld [vmem:[%s1359 + $0x10] sm:$0xff]
    %v1363 = vld [vmem:[%s1359 + $0x18] sm:$0xff]
    %v1364 = vpack.c.bf16 %v1358, %v1358
    %1365 = vmatprep.subr.bf16.mxu0 %v490
    %1366 = vmatpush1.bf16.msra.mxu0 %v489
    %1367 = vmatprep.subr.bf16.mxu0 %v494
    %1368 = vmatpush1.bf16.msra.mxu0 %v493
    %1369 = vmatprep.subr.bf16.mxu0 %v498
    %1370 = vmatpush1.bf16.msra.mxu0 %v497
    %1371 = vmatprep.subr.bf16.mxu0 %v502
    %1372 = vmatpush1.bf16.msra.mxu0 %v501
    %1373 = vmatprep.subr.bf16.mxu0 %v506
    %1374 = vmatpush1.bf16.msra.mxu0 %v505
    %1375 = vmatprep.subr.bf16.mxu0 %v510
    %1376 = vmatpush1.bf16.msra.mxu0 %v509
    %1377 = vmatprep.subr.bf16.mxu0 %v514
    %1378 = vmatpush1.bf16.msra.mxu0 %v513
    %1379 = vmatprep.subr.bf16.mxu0 %v518
    %1380 = vmatpush1.bf16.msra.mxu0 %v517
    %1381 = vmatprep.subr.bf16.mxu0 0
    %1382 = vmatpush1.bf16.msra.mxu0 0
    %1383 = vmatprep.subr.bf16.mxu0 0
    %1384 = vmatpush1.bf16.msra.mxu0 0
    %1385 = vmatprep.subr.bf16.mxu0 0
    %1386 = vmatpush1.bf16.msra.mxu0 0
    %1387 = vmatprep.subr.bf16.mxu0 0
    %1388 = vmatpush1.bf16.msra.mxu0 0
    %1389 = vmatprep.subr.bf16.mxu0 0
    %1390 = vmatpush1.bf16.msra.mxu0 0
    %1391 = vmatprep.subr.bf16.mxu0 0
    %1392 = vmatpush1.bf16.msra.mxu0 0
    %1393 = vmatprep.subr.bf16.mxu0 0
    %1394 = vmatpush1.bf16.msra.mxu0 0
    %1395 = vmatprep.subr.bf16.mxu0 0
    %1396 = vmatpush1.bf16.msra.mxu0 0
    %1397 = vmatprep.mubr.bf16.mxu0 0
    %1398 = vmatmul.mubr.bf16.gmra.mrb[0].mxu0 %v1364
    %v1399 = vpop.f32.mrb[0].mxu0
    %v1400 = vadd.f32 0.0, %v1399
    %v1401 = vpop.f32.mrb[0].mxu0
    %v1402 = vadd.f32 0.0, %v1401
    %v1403 = vpop.f32.mrb[0].mxu0
    %v1404 = vpop.f32.mrb[0].mxu0
    %1405 = vdwg.mxu0
    %1406 = vmatprep.subr.bf16.mxu0 %v492
    %1407 = vmatpush1.bf16.msra.mxu0 %v491
    %1408 = vmatprep.subr.bf16.mxu0 %v496
    %1409 = vmatpush1.bf16.msra.mxu0 %v495
    %1410 = vmatprep.subr.bf16.mxu0 %v500
    %1411 = vmatpush1.bf16.msra.mxu0 %v499
    %1412 = vmatprep.subr.bf16.mxu0 %v504
    %1413 = vmatpush1.bf16.msra.mxu0 %v503
    %1414 = vmatprep.subr.bf16.mxu0 %v508
    %1415 = vmatpush1.bf16.msra.mxu0 %v507
    %1416 = vmatprep.subr.bf16.mxu0 %v512
    %1417 = vmatpush1.bf16.msra.mxu0 %v511
    %1418 = vmatprep.subr.bf16.mxu0 %v516
    %1419 = vmatpush1.bf16.msra.mxu0 %v515
    %1420 = vmatprep.subr.bf16.mxu0 %v520
    %1421 = vmatpush1.bf16.msra.mxu0 %v519
    %1422 = vmatprep.subr.bf16.mxu0 0
    %1423 = vmatpush1.bf16.msra.mxu0 0
    %1424 = vmatprep.subr.bf16.mxu0 0
    %1425 = vmatpush1.bf16.msra.mxu0 0
    %1426 = vmatprep.subr.bf16.mxu0 0
    %1427 = vmatpush1.bf16.msra.mxu0 0
    %1428 = vmatprep.subr.bf16.mxu0 0
    %1429 = vmatpush1.bf16.msra.mxu0 0
    %1430 = vmatprep.subr.bf16.mxu0 0
    %1431 = vmatpush1.bf16.msra.mxu0 0
    %1432 = vmatprep.subr.bf16.mxu0 0
    %1433 = vmatpush1.bf16.msra.mxu0 0
    %1434 = vmatprep.subr.bf16.mxu0 0
    %1435 = vmatpush1.bf16.msra.mxu0 0
    %1436 = vmatprep.subr.bf16.mxu0 0
    %1437 = vmatpush1.bf16.msra.mxu0 0
    %1438 = vmatprep.mubr.bf16.mxu0 0
    %1439 = vmatmul.mubr.bf16.gmra.mrb[0].mxu0 %v1364
    %v1440 = vpop.f32.mrb[0].mxu0
    %v1441 = vadd.f32 0.0, %v1440
    %v1442 = vpop.f32.mrb[0].mxu0
    %v1443 = vadd.f32 0.0, %v1442
    %v1444 = vpop.f32.mrb[0].mxu0
    %v1445 = vpop.f32.mrb[0].mxu0
    %1446 = vdwg.mxu0
    %v1447 = vadd.f32 %v1360, %v1400
    %v1448 = vadd.f32 %v1361, %v1402
    %v1449 = vadd.f32 %v1362, %v1441
    %v1450 = vadd.f32 %v1363, %v1443
    %v1451 = vxor.u32 %v1447, 2147483648
    %v1452 = vmul.f32 %v1451, 1.442695
    %v1453 = vpow.pop %v1452
    %v1454 = vadd.f32 %v1453, 1.0
    %v1455 = vrcp.pop %v1454
    %v1456 = vmul.f32 1.0, %v1455
    %v1457 = vxor.u32 %v1448, 2147483648
    %v1458 = vmul.f32 %v1457, 1.442695
    %v1459 = vpow.pop %v1458
    %v1460 = vadd.f32 %v1459, 1.0
    %v1461 = vrcp.pop %v1460
    %v1462 = vmul.f32 1.0, %v1461
    %v1463 = vtanh.pop %v1449
    %v1464 = vxor.u32 %v1450, 2147483648
    %v1465 = vmul.f32 %v1464, 1.442695
    %v1466 = vpow.pop %v1465
    %v1467 = vadd.f32 %v1466, 1.0
    %v1468 = vrcp.pop %v1467
    %v1469 = vmul.f32 1.0, %v1468
    %v1470 = vmul.f32 %v1462, %v1356
    %v1471 = vmul.f32 %v1456, %v1463
    %v1472 = vadd.f32 %v1470, %v1471
    %v1473 = vtanh.pop %v1472
    %v1474 = vmul.f32 %v1469, %v1473
    %1475 = vst [vmem:[#allocation2] sm:$0xff] %v1474
    %1476 = vst [vmem:[#allocation3] sm:$0xff] %v1472
    // Predicated region
    $region58: #{tpu_custom_call.1} parent=1 // pred_check
      %p1477 = pneg %p99
    $region59: #{tpu_custom_call.1} parent=1 // pred_check_branch
      %1479 = sbr.rel (%p1477) target = $region61
    $region60: #{tpu_custom_call.1} parent=1 // pred_region
      %v1480 = vld [vmem:[#allocation11] sm:$0xff]
      %v1481 = vld [vmem:[#allocation11 + $0x8] sm:$0xff]
      %v1482 = vld [vmem:[#allocation11 + $0x10] sm:$0xff]
      %v1483 = vld [vmem:[#allocation11 + $0x18] sm:$0xff]
      %v1484 = vld [vmem:[#allocation11 + $0x20] sm:$0xff]
      %v1485 = vld [vmem:[#allocation11 + $0x28] sm:$0xff]
      %v1486 = vld [vmem:[#allocation11 + $0x30] sm:$0xff]
      %v1487 = vld [vmem:[#allocation11 + $0x38] sm:$0xff]
      %v1488 = vld [vmem:[#allocation11 + $0x40] sm:$0xff]
      %v1489 = vld [vmem:[#allocation11 + $0x48] sm:$0xff]
      %v1490 = vld [vmem:[#allocation11 + $0x50] sm:$0xff]
      %v1491 = vld [vmem:[#allocation11 + $0x58] sm:$0xff]
      %v1492 = vld [vmem:[#allocation11 + $0x60] sm:$0xff]
      %v1493 = vld [vmem:[#allocation11 + $0x68] sm:$0xff]
      %v1494 = vld [vmem:[#allocation11 + $0x70] sm:$0xff]
      %v1495 = vld [vmem:[#allocation11 + $0x78] sm:$0xff]
      %v1496 = vld [vmem:[%s5] sm:$0x1]
      %v1498 = vlaneseq
      %v1499 = vshrl.u32 %v1498, 7
      %v1500 = vsub.s32 0, %v1499
      %v1501 = vrot.slane %v1496, %v1500
      %1503 = vmatprep.subr.mxu0 0.0
      %1504 = vmatpush1.msra.mxu0 %v1480
      %1505 = vmatprep.subr.mxu0 0.0
      %1506 = vmatpush1.msra.mxu0 %v1481
      %1507 = vmatprep.subr.mxu0 0.0
      %1508 = vmatpush1.msra.mxu0 %v1482
      %1509 = vmatprep.subr.mxu0 0.0
      %1510 = vmatpush1.msra.mxu0 %v1483
      %1511 = vmatprep.subr.mxu0 0.0
      %1512 = vmatpush1.msra.mxu0 %v1484
      %1513 = vmatprep.subr.mxu0 0.0
      %1514 = vmatpush1.msra.mxu0 %v1485
      %1515 = vmatprep.subr.mxu0 0.0
      %1516 = vmatpush1.msra.mxu0 %v1486
      %1517 = vmatprep.subr.mxu0 0.0
      %1518 = vmatpush1.msra.mxu0 %v1487
      %1519 = vmatprep.subr.mxu0 0.0
      %1520 = vmatpush1.msra.mxu0 %v1488
      %1521 = vmatprep.subr.mxu0 0.0
      %1522 = vmatpush1.msra.mxu0 %v1489
      %1523 = vmatprep.subr.mxu0 0.0
      %1524 = vmatpush1.msra.mxu0 %v1490
      %1525 = vmatprep.subr.mxu0 0.0
      %1526 = vmatpush1.msra.mxu0 %v1491
      %1527 = vmatprep.subr.mxu0 0.0
      %1528 = vmatpush1.msra.mxu0 %v1492
      %1529 = vmatprep.subr.mxu0 0.0
      %1530 = vmatpush1.msra.mxu0 %v1493
      %1531 = vmatprep.subr.mxu0 0.0
      %1532 = vmatpush1.msra.mxu0 %v1494
      %1533 = vmatprep.subr.mxu0 0.0
      %1534 = vmatpush1.msra.mxu0 %v1495
      %1535 = vmatprep.subr.mxu0 0.0
      %1536 = vmatpush1.msra.mxu0 0.0
      %1537 = vmatprep.subr.mxu0 0.0
      %1538 = vmatpush1.msra.mxu0 0.0
      %1539 = vmatprep.subr.mxu0 0.0
      %1540 = vmatpush1.msra.mxu0 0.0
      %1541 = vmatprep.subr.mxu0 0.0
      %1542 = vmatpush1.msra.mxu0 0.0
      %1543 = vmatprep.subr.mxu0 0.0
      %1544 = vmatpush1.msra.mxu0 0.0
      %1545 = vmatprep.subr.mxu0 0.0
      %1546 = vmatpush1.msra.mxu0 0.0
      %1547 = vmatprep.subr.mxu0 0.0
      %1548 = vmatpush1.msra.mxu0 0.0
      %1549 = vmatprep.subr.mxu0 0.0
      %1550 = vmatpush1.msra.mxu0 0.0
      %1551 = vmatprep.subr.mxu0 0.0
      %1552 = vmatpush1.msra.mxu0 0.0
      %1553 = vmatprep.subr.mxu0 0.0
      %1554 = vmatpush1.msra.mxu0 0.0
      %1555 = vmatprep.subr.mxu0 0.0
      %1556 = vmatpush1.msra.mxu0 0.0
      %1557 = vmatprep.subr.mxu0 0.0
      %1558 = vmatpush1.msra.mxu0 0.0
      %1559 = vmatprep.subr.mxu0 0.0
      %1560 = vmatpush1.msra.mxu0 0.0
      %1561 = vmatprep.subr.mxu0 0.0
      %1562 = vmatpush1.msra.mxu0 0.0
      %1563 = vmatprep.subr.mxu0 0.0
      %1564 = vmatpush1.msra.mxu0 0.0
      %1565 = vmatprep.subr.mxu0 0.0
      %1566 = vmatpush1.msra.mxu0 0.0
      %1567 = vmatprep.mubr.f32.mxu0 0.0
      %1568 = vmatmul.mubr.f32.gmra.mrb[0].mxu0 %v1474
      %v1569 = vpop.f32.mrb[0].mxu0
      %v1570 = vadd.f32 %v1501, %v1569
      %v1571 = vpop.f32.mrb[0].mxu0
      %1572 = vdwg.mxu0
      %v1573 = vmax.f32 %v1570, 0.0
      %v1574 = vld [vmem:[#allocation13] sm:$0xff]
      %v1575 = vld [vmem:[#allocation13 + $0x8] sm:$0xff]
      %v1576 = vld [vmem:[#allocation13 + $0x10] sm:$0xff]
      %v1577 = vld [vmem:[#allocation13 + $0x18] sm:$0xff]
      %v1578 = vld [vmem:[#allocation13 + $0x20] sm:$0xff]
      %v1579 = vld [vmem:[#allocation13 + $0x28] sm:$0xff]
      %v1580 = vld [vmem:[#allocation13 + $0x30] sm:$0xff]
      %v1581 = vld [vmem:[#allocation13 + $0x38] sm:$0xff]
      %v1582 = vld [vmem:[#allocation13 + $0x40] sm:$0xff]
      %v1583 = vld [vmem:[#allocation13 + $0x48] sm:$0xff]
      %v1584 = vld [vmem:[#allocation13 + $0x50] sm:$0xff]
      %v1585 = vld [vmem:[#allocation13 + $0x58] sm:$0xff]
      %v1586 = vld [vmem:[#allocation13 + $0x60] sm:$0xff]
      %v1587 = vld [vmem:[#allocation13 + $0x68] sm:$0xff]
      %v1588 = vld [vmem:[#allocation13 + $0x70] sm:$0xff]
      %v1589 = vld [vmem:[#allocation13 + $0x78] sm:$0xff]
      %v1590 = vld [vmem:[%s7] sm:$0x1]
      %v1592 = vlaneseq
      %v1593 = vshrl.u32 %v1592, 7
      %v1594 = vsub.s32 0, %v1593
      %v1595 = vrot.slane %v1590, %v1594
      %1597 = vmatprep.subr.mxu0 0.0
      %1598 = vmatpush1.msra.mxu0 %v1574
      %1599 = vmatprep.subr.mxu0 0.0
      %1600 = vmatpush1.msra.mxu0 %v1575
      %1601 = vmatprep.subr.mxu0 0.0
      %1602 = vmatpush1.msra.mxu0 %v1576
      %1603 = vmatprep.subr.mxu0 0.0
      %1604 = vmatpush1.msra.mxu0 %v1577
      %1605 = vmatprep.subr.mxu0 0.0
      %1606 = vmatpush1.msra.mxu0 %v1578
      %1607 = vmatprep.subr.mxu0 0.0
      %1608 = vmatpush1.msra.mxu0 %v1579
      %1609 = vmatprep.subr.mxu0 0.0
      %1610 = vmatpush1.msra.mxu0 %v1580
      %1611 = vmatprep.subr.mxu0 0.0
      %1612 = vmatpush1.msra.mxu0 %v1581
      %1613 = vmatprep.subr.mxu0 0.0
      %1614 = vmatpush1.msra.mxu0 %v1582
      %1615 = vmatprep.subr.mxu0 0.0
      %1616 = vmatpush1.msra.mxu0 %v1583
      %1617 = vmatprep.subr.mxu0 0.0
      %1618 = vmatpush1.msra.mxu0 %v1584
      %1619 = vmatprep.subr.mxu0 0.0
      %1620 = vmatpush1.msra.mxu0 %v1585
      %1621 = vmatprep.subr.mxu0 0.0
      %1622 = vmatpush1.msra.mxu0 %v1586
      %1623 = vmatprep.subr.mxu0 0.0
      %1624 = vmatpush1.msra.mxu0 %v1587
      %1625 = vmatprep.subr.mxu0 0.0
      %1626 = vmatpush1.msra.mxu0 %v1588
      %1627 = vmatprep.subr.mxu0 0.0
      %1628 = vmatpush1.msra.mxu0 %v1589
      %1629 = vmatprep.subr.mxu0 0.0
      %1630 = vmatpush1.msra.mxu0 0.0
      %1631 = vmatprep.subr.mxu0 0.0
      %1632 = vmatpush1.msra.mxu0 0.0
      %1633 = vmatprep.subr.mxu0 0.0
      %1634 = vmatpush1.msra.mxu0 0.0
      %1635 = vmatprep.subr.mxu0 0.0
      %1636 = vmatpush1.msra.mxu0 0.0
      %1637 = vmatprep.subr.mxu0 0.0
      %1638 = vmatpush1.msra.mxu0 0.0
      %1639 = vmatprep.subr.mxu0 0.0
      %1640 = vmatpush1.msra.mxu0 0.0
      %1641 = vmatprep.subr.mxu0 0.0
      %1642 = vmatpush1.msra.mxu0 0.0
      %1643 = vmatprep.subr.mxu0 0.0
      %1644 = vmatpush1.msra.mxu0 0.0
      %1645 = vmatprep.subr.mxu0 0.0
      %1646 = vmatpush1.msra.mxu0 0.0
      %1647 = vmatprep.subr.mxu0 0.0
      %1648 = vmatpush1.msra.mxu0 0.0
      %1649 = vmatprep.subr.mxu0 0.0
      %1650 = vmatpush1.msra.mxu0 0.0
      %1651 = vmatprep.subr.mxu0 0.0
      %1652 = vmatpush1.msra.mxu0 0.0
      %1653 = vmatprep.subr.mxu0 0.0
      %1654 = vmatpush1.msra.mxu0 0.0
      %1655 = vmatprep.subr.mxu0 0.0
      %1656 = vmatpush1.msra.mxu0 0.0
      %1657 = vmatprep.subr.mxu0 0.0
      %1658 = vmatpush1.msra.mxu0 0.0
      %1659 = vmatprep.subr.mxu0 0.0
      %1660 = vmatpush1.msra.mxu0 0.0
      %1661 = vmatprep.mubr.f32.mxu0 0.0
      %1662 = vmatmul.mubr.f32.gmra.mrb[0].mxu0 %v1573
      %v1663 = vpop.f32.mrb[0].mxu0
      %v1664 = vadd.f32 %v1595, %v1663
      %v1665 = vpop.f32.mrb[0].mxu0
      %1666 = vdwg.mxu0
      %1667 = vst [vmem:[#allocation14] sm:$0xff] %v1664
    $region61: #{tpu_custom_call.1} parent=1 // pred_fallthru
      _
    // Predicated region
    $region62: #{tpu_custom_call.1} parent=1 // pred_check
      _
    $region63: #{tpu_custom_call.1} parent=1 // pred_check_branch
      %1669 = sbr.rel (0) target = $region65
    $region64: #{tpu_custom_call.1} parent=1 // pred_region
      %s1671 = ssub.s32 128, 128
      %1672 = vsyncadd [#allocation7], %s1671
      %s1674 = sshll.u32 [#allocation14], 4
      %s1675 = int_to_ptr.vmem [resolvable:$true] %s1674
      %1677 = dma.vmem_to_hbm [thread:$0]  %s1675, 128, %s8, [#allocation7]
    $region65: #{tpu_custom_call.1} parent=1 // pred_fallthru
      _
    // Predicated region
    $region66: #{tpu_custom_call.1} parent=1 // pred_check
      _
    $region67: #{tpu_custom_call.1} parent=1 // pred_check_branch
      %1679 = sbr.rel (0) target = $region69
    $region68: #{tpu_custom_call.1} parent=1 // pred_region
      %1680 = dma.done [#allocation7], 128
    $region69: #{tpu_custom_call.1} parent=1 // pred_fallthru
      _
    %1681 = vsyncpa [#allocation6], 1
    %1682 = vsyncpa [#allocation9], 1
    %1683 = vsyncpa [#allocation12], 1
    %1684 = vsyncpa [#allocation7], 1

</llo_original>
